<compile_context>
chip_gen: v7x
topology: tpu7x:2x2x1
jax: 0.10.0
libtpu: 0.0.40
codegen_flags: <defaults>
</compile_context>

<pallas_src>
import functools

import jax
import jax.numpy as jnp
from jax.experimental import pallas as pl
from jax.experimental.pallas import tpu as pltpu


# ----------------------------------------------------------------------------
# Pallas kernel
# ----------------------------------------------------------------------------
def _decoder_mlp_kernel(a_ref, b_ref, w1_ref, b1_ref, w2_ref, b2_ref,
                        w3_ref, b3_ref, o_ref):
    """exp(sigmoid(w3 . relu(W2t @ relu(W1t @ concat_ij(a_i*b_j) + b1) + b2) + b3)).

    Feature-major ("transposed") orientation: pair rows sit on the lane axis.

      a_ref, b_ref : [L, H, tm]     bf16  gathered src / dst embeddings
      w1_ref       : [D1, H*L*L]    bf16  W1^T
      b1_ref       : [D1, 1]        f32
      w2_ref       : [D2, D1]       bf16  W2^T
      b2_ref       : [D2, 1]        f32
      w3_ref       : [D2, 1]        f32
      b3_ref       : [1, 1]         f32
      o_ref        : [1, tm]        f32   exp(sigmoid(logit)) per pair
    """
    L = a_ref.shape[0]

    # ---- Build the concatenated feature matrix [H*L*L, tm] in VMEM only.
    pieces = [a_ref[i] * b_ref[j] for i in range(L) for j in range(L)]
    x = pieces[0] if L == 1 else jnp.concatenate(pieces, axis=0)   # bf16

    # ---- Layer 1: one MXU matmul with contraction dim H*L^2.
    h1 = jnp.dot(w1_ref[...], x, preferred_element_type=jnp.float32)
    h1 = jnp.maximum(h1 + b1_ref[...], 0.0)                        # [D1, tm] f32

    # ---- Layer 2 (MXU, bf16 inputs, f32 accumulation).
    h2 = jnp.dot(w2_ref[...], h1.astype(jnp.bfloat16),
                 preferred_element_type=jnp.float32)
    h2 = jnp.maximum(h2 + b2_ref[...], 0.0)                        # [D2, tm] f32

    # ---- Layer 3 as a VPU multiply + sublane reduction -> lane-dense row.
    logits = jnp.sum(h2 * w3_ref[...], axis=0, keepdims=True) + b3_ref[...]
    o_ref[...] = jnp.exp(jax.nn.sigmoid(logits))                   # [1, tm] f32


def _choose_row_tile(m, d1, *, granule=128, tm_max=1024):
    """Pick a row tile: multiple of 128, <=1024, >=2 grid steps when possible,
    and keep the f32 [D1, tm] activation around ~2 MiB."""
    cap = max(granule, ((2 << 20) // (4 * d1)) // granule * granule)
    tm_hi = min(tm_max, cap)
    tm = min(tm_hi, max(granule, (m + 1) // 2))      # aim for >= 2 grid steps
    return max(granule, (tm // granule) * granule)


def decoder_scores(params, a_t, b_t, *, tm=None):
    """a_t, b_t: [L, H, M] bf16 gathered embeddings -> [M] f32 scores."""
    L, H, M = a_t.shape
    D0, D1 = params["w1"].shape
    D2 = params["w2"].shape[1]
    assert D0 == H * L * L

    if tm is None:
        tm = _choose_row_tile(M, D1)
    pad = (-M) % tm
    if pad:
        a_t = jnp.pad(a_t, ((0, 0), (0, 0), (0, pad)))
        b_t = jnp.pad(b_t, ((0, 0), (0, 0), (0, pad)))
    Mp = M + pad
    grid = Mp // tm

    # Pre-transposed weights (bf16 matmul inputs, f32 biases / last layer).
    w1t = params["w1"].T.astype(jnp.bfloat16)                 # [D1, D0]
    w2t = params["w2"].T.astype(jnp.bfloat16)                 # [D2, D1]
    b1c = params["b1"].reshape(D1, 1)
    b2c = params["b2"].reshape(D2, 1)
    w3c = params["w3"].reshape(D2, 1)
    b3c = params["b3"].reshape(1, 1)

    # NOTE: weights are tiny (tens of KiB) and their index_map is constant, so
    # Pallas keeps them resident; no per-step re-DMA.
    out = pl.pallas_call(
        _decoder_mlp_kernel,
        out_shape=jax.ShapeDtypeStruct((1, Mp), jnp.float32),
        grid_spec=pltpu.PrefetchScalarGridSpec(
            num_scalar_prefetch=0,
            grid=(grid,),
            in_specs=[
                pl.BlockSpec((L, H, tm), lambda m: (0, 0, m)),   # A tile
                pl.BlockSpec((L, H, tm), lambda m: (0, 0, m)),   # B tile
                pl.BlockSpec((D1, D0), lambda m: (0, 0)),        # W1^T
                pl.BlockSpec((D1, 1), lambda m: (0, 0)),         # b1
                pl.BlockSpec((D2, D1), lambda m: (0, 0)),        # W2^T
                pl.BlockSpec((D2, 1), lambda m: (0, 0)),         # b2
                pl.BlockSpec((D2, 1), lambda m: (0, 0)),         # w3
                pl.BlockSpec((1, 1), lambda m: (0, 0)),          # b3
            ],
            out_specs=pl.BlockSpec((1, tm), lambda m: (0, m)),   # lane-dense
        ),
        compiler_params=pltpu.CompilerParams(
            dimension_semantics=("parallel",),
            vmem_limit_bytes=32 * 1024 * 1024,
        ),
    )(a_t, b_t, w1t, b1c, w2t, b2c, w3c, b3c)

    return out[0, :M]


# ----------------------------------------------------------------------------
# Parameter init (xavier_uniform weights, zero biases — matches the module's
# explicit init_weights; weights stored as [in, out] so the math is x @ W)
# ----------------------------------------------------------------------------
def xavier_uniform(key, fan_in, fan_out):
    bound = (6.0 / (fan_in + fan_out)) ** 0.5
    return jax.random.uniform(key, (fan_in, fan_out), jnp.float32,
                              minval=-bound, maxval=bound)


def init_decoder_params(key, hidden_size, num_gcn_layers):
    d0 = hidden_size * num_gcn_layers ** 2
    d1 = hidden_size * num_gcn_layers
    d2 = hidden_size
    k1, k2, k3 = jax.random.split(key, 3)
    return {
        "w1": xavier_uniform(k1, d0, d1), "b1": jnp.zeros((d1,), jnp.float32),
        "w2": xavier_uniform(k2, d1, d2), "b2": jnp.zeros((d2,), jnp.float32),
        "w3": xavier_uniform(k3, d2, 1), "b3": jnp.zeros((1,), jnp.float32),
    }


# ----------------------------------------------------------------------------
# Decoder forward
# ----------------------------------------------------------------------------
@functools.partial(jax.jit, static_argnames=("num_gcn_layers",))
def decoder_forward(params, embeds, pos, neg, *, num_gcn_layers):
    """embeds: [L, N, H], pos: [P, 2] int32, neg: [P, K, 2] int32 -> scalar."""
    L = num_gcn_layers
    assert embeds.shape[0] == L
    P = pos.shape[0]
    K = neg.shape[1]

    # Gather src/dst rows for all (pos, flattened neg) pairs, feature-major.
    rows_a = jnp.concatenate([pos[:, 0], neg[:, :, 0].reshape(-1)])   # [M]
    rows_b = jnp.concatenate([pos[:, 1], neg[:, :, 1].reshape(-1)])
    embT = jnp.transpose(embeds, (0, 2, 1))                           # [L, H, N]
    a_t = jnp.take(embT, rows_a, axis=2).astype(jnp.bfloat16)         # [L, H, M]
    b_t = jnp.take(embT, rows_b, axis=2).astype(jnp.bfloat16)

    scores = decoder_scores(params, a_t, b_t)                         # [M]

    # TODO(synk): this tiny per-P epilogue (sum over K + ratio + sum) stays in
    # XLA; its traffic is only M*4 bytes, not worth a second kernel.
    pos_scr = scores[:P]                                              # [P]
    neg_scr = scores[P:].reshape(P, K).sum(axis=-1) + pos_scr         # [P]
    loss = -jnp.sum(pos_scr / (neg_scr + 1e-08) + 1e-08)
    return loss


# ----------------------------------------------------------------------------
# Pure-JAX references (for validation)
# ----------------------------------------------------------------------------
def decoder_forward_ref(params, embeds, pos, neg, num_gcn_layers):
    """Straight f32 port of the PyTorch module."""
    L = num_gcn_layers
    pos_pieces, neg_pieces = [], []
    for i in range(L):
        for j in range(L):
            pos_pieces.append(embeds[i][pos[:, 0]] * embeds[j][pos[:, 1]])
            neg_pieces.append(embeds[i][neg[:, :, 0]] * embeds[j][neg[:, :, 1]])
    pos_emb = jnp.concatenate(pos_pieces, -1)
    neg_emb = jnp.concatenate(neg_pieces, -1)

    def mlp(x):
        h = jnp.maximum(x @ params["w1"] + params["b1"], 0.0)
        h = jnp.maximum(h @ params["w2"] + params["b2"], 0.0)
        return jax.nn.sigmoid(h @ params["w3"] + params["b3"])

    pos_scr = jnp.exp(jnp.squeeze(mlp(pos_emb), -1))
    neg_scr = jnp.exp(jnp.squeeze(mlp(neg_emb), -1))
    neg_scr = jnp.sum(neg_scr, -1) + pos_scr
    return -jnp.sum(pos_scr / (neg_scr + 1e-08) + 1e-08)


def decoder_forward_ref_mixed(params, embeds, pos, neg, num_gcn_layers):
    """Mirrors the kernel math (bf16 matmul inputs, f32 accumulation)."""
    L = num_gcn_layers
    P, K = pos.shape[0], neg.shape[1]
    rows_a = jnp.concatenate([pos[:, 0], neg[:, :, 0].reshape(-1)])
    rows_b = jnp.concatenate([pos[:, 1], neg[:, :, 1].reshape(-1)])
    a = embeds[:, rows_a, :].astype(jnp.bfloat16)                     # [L, M, H]
    b = embeds[:, rows_b, :].astype(jnp.bfloat16)

    x = jnp.concatenate([a[i] * b[j] for i in range(L) for j in range(L)],
                        axis=-1)                                      # [M, D0] bf16
    h1 = jnp.dot(x, params["w1"].astype(jnp.bfloat16),
                 preferred_element_type=jnp.float32)
    h1 = jnp.maximum(h1 + params["b1"], 0.0)
    h2 = jnp.dot(h1.astype(jnp.bfloat16), params["w2"].astype(jnp.bfloat16),
                 preferred_element_type=jnp.float32)
    h2 = jnp.maximum(h2 + params["b2"], 0.0)
    scores = jnp.exp(jax.nn.sigmoid(h2 @ params["w3"] + params["b3"]))[:, 0]

    pos_scr = scores[:P]
    neg_scr = scores[P:].reshape(P, K).sum(-1) + pos_scr
    return -jnp.sum(pos_scr / (neg_scr + 1e-08) + 1e-08)


if __name__ == "__main__":
    # Small config: hidden_size=32, num_gcn_layers=2 -> MLP dims 128 -> 64 -> 32 -> 1.
    # M = P*(1+K) = 384 pairs -> tm=128, grid of 3 parallel steps.
    H, L = 32, 2
    N_NODES, P, K = 64, 64, 5

    key = jax.random.PRNGKey(0)
    kp, ke, kpos, kneg = jax.random.split(key, 4)

    params = init_decoder_params(kp, H, L)
    embeds = jax.random.normal(ke, (L, N_NODES, H), jnp.float32)
    pos = jax.random.randint(kpos, (P, 2), 0, N_NODES, jnp.int32)
    neg = jax.random.randint(kneg, (P, K, 2), 0, N_NODES, jnp.int32)

    loss = decoder_forward(params, embeds, pos, neg, num_gcn_layers=L)
    loss = jax.block_until_ready(loss)

    loss_mixed = decoder_forward_ref_mixed(params, embeds, pos, neg, L)
    loss_f32 = decoder_forward_ref(params, embeds, pos, neg, L)

    # Tight check against the math the kernel actually implements (bf16 MXU
    # inputs, f32 accumulation), loose check against the f32 module semantics.
    assert jnp.allclose(loss, loss_mixed, rtol=2e-3, atol=2e-3), (loss, loss_mixed)
    assert jnp.allclose(loss, loss_f32, rtol=5e-2, atol=5e-2), (loss, loss_f32)

    print("KERNEL_OK")
</pallas_src>

<mosaic_0001>
module attributes {stable_mosaic.version = 11 : i64} {
  func.func @_decoder_mlp_kernel(%arg0: i32, %arg1: memref<2x32x128xbf16, #tpu.memory_space<vmem>>, %arg2: memref<2x32x128xbf16, #tpu.memory_space<vmem>>, %arg3: memref<64x128xbf16, #tpu.memory_space<vmem>>, %arg4: memref<64x1xf32, #tpu.memory_space<vmem>>, %arg5: memref<32x64xbf16, #tpu.memory_space<vmem>>, %arg6: memref<32x1xf32, #tpu.memory_space<vmem>>, %arg7: memref<32x1xf32, #tpu.memory_space<vmem>>, %arg8: memref<1x1xf32, #tpu.memory_space<vmem>>, %arg9: memref<1x128xf32, #tpu.memory_space<vmem>>) attributes {dimension_semantics = [#tpu.dimension_semantics<parallel>], iteration_bounds = array<i64: 3>, scalar_prefetch = 0 : i64, scratch_operands = 0 : i64, tpu.core_type = #tpu.core_type<tc>, window_params = [{transform_indices = @transform_0, window_bounds = array<i64: 2, 32, 128>}, {transform_indices = @transform_1, window_bounds = array<i64: 2, 32, 128>}, {pipeline_mode = #tpu.pipeline_mode<synchronous>, transform_indices = @transform_2, window_bounds = array<i64: 64, 128>}, {pipeline_mode = #tpu.pipeline_mode<synchronous>, transform_indices = @transform_3, window_bounds = array<i64: 64, 1>}, {pipeline_mode = #tpu.pipeline_mode<synchronous>, transform_indices = @transform_4, window_bounds = array<i64: 32, 64>}, {pipeline_mode = #tpu.pipeline_mode<synchronous>, transform_indices = @transform_5, window_bounds = array<i64: 32, 1>}, {pipeline_mode = #tpu.pipeline_mode<synchronous>, transform_indices = @transform_6, window_bounds = array<i64: 32, 1>}, {pipeline_mode = #tpu.pipeline_mode<synchronous>, transform_indices = @transform_7, window_bounds = array<i64: 1, 1>}, {transform_indices = @transform_8, window_bounds = array<i64: 1, 128>}]} {
    %c0 = arith.constant 0 : index
    %c0_0 = arith.constant 0 : index
    %c0_1 = arith.constant 0 : index
    %0 = vector.load %arg1[%c0, %c0_0, %c0_1] : memref<2x32x128xbf16, #tpu.memory_space<vmem>>, vector<1x32x128xbf16>
    %1 = vector.shape_cast %0 : vector<1x32x128xbf16> to vector<32x128xbf16>
    %c0_2 = arith.constant 0 : index
    %c0_3 = arith.constant 0 : index
    %c0_4 = arith.constant 0 : index
    %2 = vector.load %arg2[%c0_2, %c0_3, %c0_4] : memref<2x32x128xbf16, #tpu.memory_space<vmem>>, vector<1x32x128xbf16>
    %3 = vector.shape_cast %2 : vector<1x32x128xbf16> to vector<32x128xbf16>
    %4 = arith.mulf %1, %3 : vector<32x128xbf16>
    %c0_5 = arith.constant 0 : index
    %c0_6 = arith.constant 0 : index
    %c0_7 = arith.constant 0 : index
    %5 = vector.load %arg1[%c0_5, %c0_6, %c0_7] : memref<2x32x128xbf16, #tpu.memory_space<vmem>>, vector<1x32x128xbf16>
    %6 = vector.shape_cast %5 : vector<1x32x128xbf16> to vector<32x128xbf16>
    %c1 = arith.constant 1 : index
    %c0_8 = arith.constant 0 : index
    %c0_9 = arith.constant 0 : index
    %7 = vector.load %arg2[%c1, %c0_8, %c0_9] : memref<2x32x128xbf16, #tpu.memory_space<vmem>>, vector<1x32x128xbf16>
    %8 = vector.shape_cast %7 : vector<1x32x128xbf16> to vector<32x128xbf16>
    %9 = arith.mulf %6, %8 : vector<32x128xbf16>
    %c1_10 = arith.constant 1 : index
    %c0_11 = arith.constant 0 : index
    %c0_12 = arith.constant 0 : index
    %10 = vector.load %arg1[%c1_10, %c0_11, %c0_12] : memref<2x32x128xbf16, #tpu.memory_space<vmem>>, vector<1x32x128xbf16>
    %11 = vector.shape_cast %10 : vector<1x32x128xbf16> to vector<32x128xbf16>
    %c0_13 = arith.constant 0 : index
    %c0_14 = arith.constant 0 : index
    %c0_15 = arith.constant 0 : index
    %12 = vector.load %arg2[%c0_13, %c0_14, %c0_15] : memref<2x32x128xbf16, #tpu.memory_space<vmem>>, vector<1x32x128xbf16>
    %13 = vector.shape_cast %12 : vector<1x32x128xbf16> to vector<32x128xbf16>
    %14 = arith.mulf %11, %13 : vector<32x128xbf16>
    %c1_16 = arith.constant 1 : index
    %c0_17 = arith.constant 0 : index
    %c0_18 = arith.constant 0 : index
    %15 = vector.load %arg1[%c1_16, %c0_17, %c0_18] : memref<2x32x128xbf16, #tpu.memory_space<vmem>>, vector<1x32x128xbf16>
    %16 = vector.shape_cast %15 : vector<1x32x128xbf16> to vector<32x128xbf16>
    %c1_19 = arith.constant 1 : index
    %c0_20 = arith.constant 0 : index
    %c0_21 = arith.constant 0 : index
    %17 = vector.load %arg2[%c1_19, %c0_20, %c0_21] : memref<2x32x128xbf16, #tpu.memory_space<vmem>>, vector<1x32x128xbf16>
    %18 = vector.shape_cast %17 : vector<1x32x128xbf16> to vector<32x128xbf16>
    %19 = arith.mulf %16, %18 : vector<32x128xbf16>
    %20 = tpu.concatenate %4, %9, %14, %19 in 0 : vector<32x128xbf16>, vector<32x128xbf16>, vector<32x128xbf16>, vector<32x128xbf16> -> vector<128x128xbf16>
    %c0_22 = arith.constant 0 : index
    %c0_23 = arith.constant 0 : index
    %21 = vector.load %arg3[%c0_22, %c0_23] : memref<64x128xbf16, #tpu.memory_space<vmem>>, vector<64x128xbf16>
    %cst = arith.constant dense<0.000000e+00> : vector<64x128xf32>
    %22 = tpu.matmul %21, %20, %cst {dimension_numbers = #tpu.dot_dimension_numbers<[1], [0], [0], [1], [0, 0, 1, 1], [], []>} : vector<64x128xbf16>, vector<128x128xbf16>, vector<64x128xf32> -> vector<64x128xf32>
    %c0_24 = arith.constant 0 : index
    %c0_25 = arith.constant 0 : index
    %23 = vector.load %arg4[%c0_24, %c0_25] : memref<64x1xf32, #tpu.memory_space<vmem>>, vector<64x1xf32>
    %24 = vector.broadcast %23 : vector<64x1xf32> to vector<64x128xf32>
    %25 = arith.addf %22, %24 : vector<64x128xf32>
    %cst_26 = arith.constant 0.000000e+00 : f32
    %26 = vector.broadcast %cst_26 : f32 to vector<64x128xf32>
    %27 = arith.maximumf %25, %26 : vector<64x128xf32>
    %c0_27 = arith.constant 0 : index
    %c0_28 = arith.constant 0 : index
    %28 = vector.load %arg5[%c0_27, %c0_28] : memref<32x64xbf16, #tpu.memory_space<vmem>>, vector<32x64xbf16>
    %29 = arith.truncf %27 : vector<64x128xf32> to vector<64x128xbf16>
    %cst_29 = arith.constant dense<0.000000e+00> : vector<32x128xf32>
    %30 = tpu.matmul %28, %29, %cst_29 {dimension_numbers = #tpu.dot_dimension_numbers<[1], [0], [0], [1], [0, 0, 1, 1], [], []>} : vector<32x64xbf16>, vector<64x128xbf16>, vector<32x128xf32> -> vector<32x128xf32>
    %c0_30 = arith.constant 0 : index
    %c0_31 = arith.constant 0 : index
    %31 = vector.load %arg6[%c0_30, %c0_31] : memref<32x1xf32, #tpu.memory_space<vmem>>, vector<32x1xf32>
    %32 = vector.broadcast %31 : vector<32x1xf32> to vector<32x128xf32>
    %33 = arith.addf %30, %32 : vector<32x128xf32>
    %cst_32 = arith.constant 0.000000e+00 : f32
    %34 = vector.broadcast %cst_32 : f32 to vector<32x128xf32>
    %35 = arith.maximumf %33, %34 : vector<32x128xf32>
    %c0_33 = arith.constant 0 : index
    %c0_34 = arith.constant 0 : index
    %36 = vector.load %arg7[%c0_33, %c0_34] : memref<32x1xf32, #tpu.memory_space<vmem>>, vector<32x1xf32>
    %37 = vector.broadcast %36 : vector<32x1xf32> to vector<32x128xf32>
    %38 = arith.mulf %35, %37 : vector<32x128xf32>
    %cst_35 = arith.constant dense<0.000000e+00> : vector<128xf32>
    %39 = vector.multi_reduction <add>, %38, %cst_35 [0] : vector<32x128xf32> to vector<128xf32>
    %40 = vector.shape_cast %39 : vector<128xf32> to vector<1x128xf32>
    %c0_36 = arith.constant 0 : index
    %c0_37 = arith.constant 0 : index
    %41 = vector.load %arg8[%c0_36, %c0_37] : memref<1x1xf32, #tpu.memory_space<vmem>>, vector<1x1xf32>
    %42 = vector.broadcast %41 : vector<1x1xf32> to vector<1x128xf32>
    %43 = arith.addf %40, %42 : vector<1x128xf32>
    %44 = arith.negf %43 : vector<1x128xf32>
    %45 = math.exp %44 : vector<1x128xf32>
    %cst_38 = arith.constant 1.000000e+00 : f32
    %46 = vector.broadcast %cst_38 : f32 to vector<1x128xf32>
    %47 = arith.addf %46, %45 : vector<1x128xf32>
    %48 = arith.divf %46, %47 : vector<1x128xf32>
    %49 = math.exp %48 : vector<1x128xf32>
    %c0_39 = arith.constant 0 : index
    %c0_40 = arith.constant 0 : index
    %50 = vector.load %arg9[%c0_39, %c0_40] : memref<1x128xf32, #tpu.memory_space<vmem>>, vector<1x128xf32>
    tpu.vector_store %arg9[%c0_39, %c0_40], %49 {strides = array<i32>} : memref<1x128xf32, #tpu.memory_space<vmem>>, vector<1x128xf32>,
    return
  }
  func.func @transform_0(%arg0: i32) -> (i32, i32, i32) {
    %c0_i32 = arith.constant 0 : i32
    %c0_i32_0 = arith.constant 0 : i32
    %c0_i32_1 = arith.constant 0 : i32
    return %c0_i32, %c0_i32_0, %arg0 : i32, i32, i32
  }
  func.func @transform_1(%arg0: i32) -> (i32, i32, i32) {
    %c0_i32 = arith.constant 0 : i32
    %c0_i32_0 = arith.constant 0 : i32
    %c0_i32_1 = arith.constant 0 : i32
    return %c0_i32, %c0_i32_0, %arg0 : i32, i32, i32
  }
  func.func @transform_2(%arg0: i32) -> (i32, i32) {
    %c0_i32 = arith.constant 0 : i32
    %c0_i32_0 = arith.constant 0 : i32
    %c0_i32_1 = arith.constant 0 : i32
    return %c0_i32, %c0_i32_0 : i32, i32
  }
  func.func @transform_3(%arg0: i32) -> (i32, i32) {
    %c0_i32 = arith.constant 0 : i32
    %c0_i32_0 = arith.constant 0 : i32
    %c0_i32_1 = arith.constant 0 : i32
    return %c0_i32, %c0_i32_0 : i32, i32
  }
  func.func @transform_4(%arg0: i32) -> (i32, i32) {
    %c0_i32 = arith.constant 0 : i32
    %c0_i32_0 = arith.constant 0 : i32
    %c0_i32_1 = arith.constant 0 : i32
    return %c0_i32, %c0_i32_0 : i32, i32
  }
  func.func @transform_5(%arg0: i32) -> (i32, i32) {
    %c0_i32 = arith.constant 0 : i32
    %c0_i32_0 = arith.constant 0 : i32
    %c0_i32_1 = arith.constant 0 : i32
    return %c0_i32, %c0_i32_0 : i32, i32
  }
  func.func @transform_6(%arg0: i32) -> (i32, i32) {
    %c0_i32 = arith.constant 0 : i32
    %c0_i32_0 = arith.constant 0 : i32
    %c0_i32_1 = arith.constant 0 : i32
    return %c0_i32, %c0_i32_0 : i32, i32
  }
  func.func @transform_7(%arg0: i32) -> (i32, i32) {
    %c0_i32 = arith.constant 0 : i32
    %c0_i32_0 = arith.constant 0 : i32
    %c0_i32_1 = arith.constant 0 : i32
    return %c0_i32, %c0_i32_0 : i32, i32
  }
  func.func @transform_8(%arg0: i32) -> (i32, i32) {
    %c0_i32 = arith.constant 0 : i32
    %c0_i32_0 = arith.constant 0 : i32
    return %c0_i32, %arg0 : i32, i32
  }
}

</mosaic_0001>

<llo_original>
// kernel: squeeze.6
$region0: #{squeeze.6}
  %s0 = inlined_call_operand.vmem [shape: s32[64,5,1], index: 0, kind: input, shape index: {}]
  %s1 = inlined_call_operand.vmem [shape: s32[320], index: 1, kind: output, shape index: {}]
  $region1: #{squeeze.6} parent=0
    #allocation0 [shape = 'u8[4096]{0}', space=vmem, size = 0x1000, scoped, tag = 'scoped mem for output reshape']
    %v2 = vld [vmem:[%s0] sm:$0x1]
    %vm3 = vcmask 39936
    %4 = vst.msk [vmem:[#allocation0] sm:$0x1] %vm3, %v2
    %s5 = scalar_lea.vmem %s0, 51
    %v6 = vld [vmem:[%s5] sm:$0x1]
    %s7 = scalar_lea.vmem %s0, 51
    %v8 = vld [vmem:[%s7] sm:$0x1]
    %vm9 = vcmask 7168
    %v10 = vsel %vm9, %v8, %v6
    %11 = vrot.lane.b32.xlu0 %v10, 127
    %v12 = vpop.permute.xlu0 %11
    %vm13 = vcmask 31744
    %s14 = scalar_lea.vmem [#allocation0], 2
    %15 = vst.msk [vmem:[%s14] sm:$0x1] %vm13, %v12
    %vm16 = vcmask 1048568
    %s17 = scalar_lea.vmem [#allocation0], 1
    %18 = vst.msk [vmem:[%s17] sm:$0x1] %vm16, %v12
    %s19 = scalar_lea.vmem %s0, 25
    %v20 = vld [vmem:[%s19] sm:$0x1]
    %s21 = scalar_lea.vmem %s0, 25
    %v22 = vld [vmem:[%s21] sm:$0x1]
    %vm23 = vcmask 23552
    %v24 = vsel %vm23, %v22, %v20
    %25 = vrot.lane.b32.xlu0 %v24, 125
    %v26 = vpop.permute.xlu0 %25
    %vm27 = vcmask 15360
    %s28 = scalar_lea.vmem [#allocation0], 1
    %29 = vst.msk [vmem:[%s28] sm:$0x1] %vm27, %v26
    %vm30 = vcmask 1048552
    %31 = vst.msk [vmem:[#allocation0] sm:$0x1] %vm30, %v26
    %s32 = scalar_lea.vmem %s0, 50
    %v33 = vld [vmem:[%s32] sm:$0x1]
    %34 = vrot.lane.b32.xlu0 %v33, 122
    %v35 = vpop.permute.xlu0 %34
    %vm36 = vcmask 1040336
    %s37 = scalar_lea.vmem [#allocation0], 1
    %38 = vst.msk [vmem:[%s37] sm:$0x1] %vm36, %v35
    %s39 = scalar_lea.vmem %s0, 24
    %v40 = vld [vmem:[%s39] sm:$0x1]
    %41 = vrot.lane.b32.xlu0 %v40, 120
    %v42 = vpop.permute.xlu0 %41
    %vm43 = vcmask 1023936
    %44 = vst.msk [vmem:[#allocation0] sm:$0x1] %vm43, %v42
    %s45 = scalar_lea.vmem %s0, 49
    %v46 = vld [vmem:[%s45] sm:$0x1]
    %47 = vrot.lane.b32.xlu0 %v46, 117
    %v48 = vpop.permute.xlu0 %47
    %vm49 = vcmask 999336
    %s50 = scalar_lea.vmem [#allocation0], 1
    %51 = vst.msk [vmem:[%s50] sm:$0x1] %vm49, %v48
    %s52 = scalar_lea.vmem %s0, 23
    %v53 = vld [vmem:[%s52] sm:$0x1]
    %54 = vrot.lane.b32.xlu0 %v53, 115
    %v55 = vpop.permute.xlu0 %54
    %vm56 = vcmask 982936
    %57 = vst.msk [vmem:[#allocation0] sm:$0x1] %vm56, %v55
    %s58 = scalar_lea.vmem %s0, 48
    %v59 = vld [vmem:[%s58] sm:$0x1]
    %60 = vrot.lane.b32.xlu0 %v59, 112
    %v61 = vpop.permute.xlu0 %60
    %vm62 = vcmask 958336
    %s63 = scalar_lea.vmem [#allocation0], 1
    %64 = vst.msk [vmem:[%s63] sm:$0x1] %vm62, %v61
    %s65 = scalar_lea.vmem %s0, 22
    %v66 = vld [vmem:[%s65] sm:$0x1]
    %67 = vrot.lane.b32.xlu0 %v66, 110
    %v68 = vpop.permute.xlu0 %67
    %vm69 = vcmask 941936
    %70 = vst.msk [vmem:[#allocation0] sm:$0x1] %vm69, %v68
    %s71 = scalar_lea.vmem %s0, 47
    %v72 = vld [vmem:[%s71] sm:$0x1]
    %73 = vrot.lane.b32.xlu0 %v72, 107
    %v74 = vpop.permute.xlu0 %73
    %vm75 = vcmask 917336
    %s76 = scalar_lea.vmem [#allocation0], 1
    %77 = vst.msk [vmem:[%s76] sm:$0x1] %vm75, %v74
    %s78 = scalar_lea.vmem %s0, 21
    %v79 = vld [vmem:[%s78] sm:$0x1]
    %80 = vrot.lane.b32.xlu0 %v79, 105
    %v81 = vpop.permute.xlu0 %80
    %vm82 = vcmask 900936
    %83 = vst.msk [vmem:[#allocation0] sm:$0x1] %vm82, %v81
    %s84 = scalar_lea.vmem %s0, 46
    %v85 = vld [vmem:[%s84] sm:$0x1]
    %86 = vrot.lane.b32.xlu0 %v85, 102
    %v87 = vpop.permute.xlu0 %86
    %vm88 = vcmask 876336
    %s89 = scalar_lea.vmem [#allocation0], 1
    %90 = vst.msk [vmem:[%s89] sm:$0x1] %vm88, %v87
    %s91 = scalar_lea.vmem %s0, 20
    %v92 = vld [vmem:[%s91] sm:$0x1]
    %93 = vrot.lane.b32.xlu0 %v92, 100
    %v94 = vpop.permute.xlu0 %93
    %vm95 = vcmask 859936
    %96 = vst.msk [vmem:[#allocation0] sm:$0x1] %vm95, %v94
    %s97 = scalar_lea.vmem %s0, 45
    %v98 = vld [vmem:[%s97] sm:$0x1]
    %99 = vrot.lane.b32.xlu0 %v98, 97
    %v100 = vpop.permute.xlu0 %99
    %vm101 = vcmask 835336
    %s102 = scalar_lea.vmem [#allocation0], 1
    %103 = vst.msk [vmem:[%s102] sm:$0x1] %vm101, %v100
    %s104 = scalar_lea.vmem %s0, 19
    %v105 = vld [vmem:[%s104] sm:$0x1]
    %106 = vrot.lane.b32.xlu0 %v105, 95
    %v107 = vpop.permute.xlu0 %106
    %vm108 = vcmask 818936
    %109 = vst.msk [vmem:[#allocation0] sm:$0x1] %vm108, %v107
    %s110 = scalar_lea.vmem %s0, 44
    %v111 = vld [vmem:[%s110] sm:$0x1]
    %112 = vrot.lane.b32.xlu0 %v111, 92
    %v113 = vpop.permute.xlu0 %112
    %vm114 = vcmask 794336
    %s115 = scalar_lea.vmem [#allocation0], 1
    %116 = vst.msk [vmem:[%s115] sm:$0x1] %vm114, %v113
    %s117 = scalar_lea.vmem %s0, 18
    %v118 = vld [vmem:[%s117] sm:$0x1]
    %119 = vrot.lane.b32.xlu0 %v118, 90
    %v120 = vpop.permute.xlu0 %119
    %vm121 = vcmask 777936
    %122 = vst.msk [vmem:[#allocation0] sm:$0x1] %vm121, %v120
    %s123 = scalar_lea.vmem %s0, 43
    %v124 = vld [vmem:[%s123] sm:$0x1]
    %125 = vrot.lane.b32.xlu0 %v124, 87
    %v126 = vpop.permute.xlu0 %125
    %vm127 = vcmask 753336
    %s128 = scalar_lea.vmem [#allocation0], 1
    %129 = vst.msk [vmem:[%s128] sm:$0x1] %vm127, %v126
    %s130 = scalar_lea.vmem %s0, 17
    %v131 = vld [vmem:[%s130] sm:$0x1]
    %132 = vrot.lane.b32.xlu0 %v131, 85
    %v133 = vpop.permute.xlu0 %132
    %vm134 = vcmask 736936
    %135 = vst.msk [vmem:[#allocation0] sm:$0x1] %vm134, %v133
    %s136 = scalar_lea.vmem %s0, 42
    %v137 = vld [vmem:[%s136] sm:$0x1]
    %138 = vrot.lane.b32.xlu0 %v137, 82
    %v139 = vpop.permute.xlu0 %138
    %vm140 = vcmask 712336
    %s141 = scalar_lea.vmem [#allocation0], 1
    %142 = vst.msk [vmem:[%s141] sm:$0x1] %vm140, %v139
    %s143 = scalar_lea.vmem %s0, 16
    %v144 = vld [vmem:[%s143] sm:$0x1]
    %145 = vrot.lane.b32.xlu0 %v144, 80
    %v146 = vpop.permute.xlu0 %145
    %vm147 = vcmask 695936
    %148 = vst.msk [vmem:[#allocation0] sm:$0x1] %vm147, %v146
    %s149 = scalar_lea.vmem %s0, 41
    %v150 = vld [vmem:[%s149] sm:$0x1]
    %151 = vrot.lane.b32.xlu0 %v150, 77
    %v152 = vpop.permute.xlu0 %151
    %vm153 = vcmask 671336
    %s154 = scalar_lea.vmem [#allocation0], 1
    %155 = vst.msk [vmem:[%s154] sm:$0x1] %vm153, %v152
    %s156 = scalar_lea.vmem %s0, 15
    %v157 = vld [vmem:[%s156] sm:$0x1]
    %158 = vrot.lane.b32.xlu0 %v157, 75
    %v159 = vpop.permute.xlu0 %158
    %vm160 = vcmask 654936
    %161 = vst.msk [vmem:[#allocation0] sm:$0x1] %vm160, %v159
    %s162 = scalar_lea.vmem %s0, 40
    %v163 = vld [vmem:[%s162] sm:$0x1]
    %164 = vrot.lane.b32.xlu0 %v163, 72
    %v165 = vpop.permute.xlu0 %164
    %vm166 = vcmask 630336
    %s167 = scalar_lea.vmem [#allocation0], 1
    %168 = vst.msk [vmem:[%s167] sm:$0x1] %vm166, %v165
    %s169 = scalar_lea.vmem %s0, 14
    %v170 = vld [vmem:[%s169] sm:$0x1]
    %171 = vrot.lane.b32.xlu0 %v170, 70
    %v172 = vpop.permute.xlu0 %171
    %vm173 = vcmask 613936
    %174 = vst.msk [vmem:[#allocation0] sm:$0x1] %vm173, %v172
    %s175 = scalar_lea.vmem %s0, 39
    %v176 = vld [vmem:[%s175] sm:$0x1]
    %177 = vrot.lane.b32.xlu0 %v176, 67
    %v178 = vpop.permute.xlu0 %177
    %vm179 = vcmask 589336
    %s180 = scalar_lea.vmem [#allocation0], 1
    %181 = vst.msk [vmem:[%s180] sm:$0x1] %vm179, %v178
    %s182 = scalar_lea.vmem %s0, 13
    %v183 = vld [vmem:[%s182] sm:$0x1]
    %184 = vrot.lane.b32.xlu0 %v183, 65
    %v185 = vpop.permute.xlu0 %184
    %vm186 = vcmask 572936
    %187 = vst.msk [vmem:[#allocation0] sm:$0x1] %vm186, %v185
    %s188 = scalar_lea.vmem %s0, 38
    %v189 = vld [vmem:[%s188] sm:$0x1]
    %190 = vrot.lane.b32.xlu0 %v189, 62
    %v191 = vpop.permute.xlu0 %190
    %vm192 = vcmask 548336
    %s193 = scalar_lea.vmem [#allocation0], 1
    %194 = vst.msk [vmem:[%s193] sm:$0x1] %vm192, %v191
    %s195 = scalar_lea.vmem %s0, 12
    %v196 = vld [vmem:[%s195] sm:$0x1]
    %197 = vrot.lane.b32.xlu0 %v196, 60
    %v198 = vpop.permute.xlu0 %197
    %vm199 = vcmask 531936
    %200 = vst.msk [vmem:[#allocation0] sm:$0x1] %vm199, %v198
    %s201 = scalar_lea.vmem %s0, 63
    %v202 = vld [vmem:[%s201] sm:$0x1]
    %203 = vrot.lane.b32.xlu0 %v202, 59
    %v204 = vpop.permute.xlu0 %203
    %vm205 = vcmask 523736
    %s206 = scalar_lea.vmem [#allocation0], 2
    %207 = vst.msk [vmem:[%s206] sm:$0x1] %vm205, %v204
    %s208 = scalar_lea.vmem %s0, 37
    %v209 = vld [vmem:[%s208] sm:$0x1]
    %210 = vrot.lane.b32.xlu0 %v209, 57
    %v211 = vpop.permute.xlu0 %210
    %vm212 = vcmask 507336
    %s213 = scalar_lea.vmem [#allocation0], 1
    %214 = vst.msk [vmem:[%s213] sm:$0x1] %vm212, %v211
    %s215 = scalar_lea.vmem %s0, 11
    %v216 = vld [vmem:[%s215] sm:$0x1]
    %217 = vrot.lane.b32.xlu0 %v216, 55
    %v218 = vpop.permute.xlu0 %217
    %vm219 = vcmask 490936
    %220 = vst.msk [vmem:[#allocation0] sm:$0x1] %vm219, %v218
    %s221 = scalar_lea.vmem %s0, 62
    %v222 = vld [vmem:[%s221] sm:$0x1]
    %223 = vrot.lane.b32.xlu0 %v222, 54
    %v224 = vpop.permute.xlu0 %223
    %vm225 = vcmask 482736
    %s226 = scalar_lea.vmem [#allocation0], 2
    %227 = vst.msk [vmem:[%s226] sm:$0x1] %vm225, %v224
    %s228 = scalar_lea.vmem %s0, 36
    %v229 = vld [vmem:[%s228] sm:$0x1]
    %230 = vrot.lane.b32.xlu0 %v229, 52
    %v231 = vpop.permute.xlu0 %230
    %vm232 = vcmask 466336
    %s233 = scalar_lea.vmem [#allocation0], 1
    %234 = vst.msk [vmem:[%s233] sm:$0x1] %vm232, %v231
    %s235 = scalar_lea.vmem %s0, 10
    %v236 = vld [vmem:[%s235] sm:$0x1]
    %237 = vrot.lane.b32.xlu0 %v236, 50
    %v238 = vpop.permute.xlu0 %237
    %vm239 = vcmask 449936
    %240 = vst.msk [vmem:[#allocation0] sm:$0x1] %vm239, %v238
    %s241 = scalar_lea.vmem %s0, 61
    %v242 = vld [vmem:[%s241] sm:$0x1]
    %243 = vrot.lane.b32.xlu0 %v242, 49
    %v244 = vpop.permute.xlu0 %243
    %vm245 = vcmask 441736
    %s246 = scalar_lea.vmem [#allocation0], 2
    %247 = vst.msk [vmem:[%s246] sm:$0x1] %vm245, %v244
    %s248 = scalar_lea.vmem %s0, 35
    %v249 = vld [vmem:[%s248] sm:$0x1]
    %250 = vrot.lane.b32.xlu0 %v249, 47
    %v251 = vpop.permute.xlu0 %250
    %vm252 = vcmask 425336
    %s253 = scalar_lea.vmem [#allocation0], 1
    %254 = vst.msk [vmem:[%s253] sm:$0x1] %vm252, %v251
    %s255 = scalar_lea.vmem %s0, 9
    %v256 = vld [vmem:[%s255] sm:$0x1]
    %257 = vrot.lane.b32.xlu0 %v256, 45
    %v258 = vpop.permute.xlu0 %257
    %vm259 = vcmask 408936
    %260 = vst.msk [vmem:[#allocation0] sm:$0x1] %vm259, %v258
    %s261 = scalar_lea.vmem %s0, 60
    %v262 = vld [vmem:[%s261] sm:$0x1]
    %263 = vrot.lane.b32.xlu0 %v262, 44
    %v264 = vpop.permute.xlu0 %263
    %vm265 = vcmask 400736
    %s266 = scalar_lea.vmem [#allocation0], 2
    %267 = vst.msk [vmem:[%s266] sm:$0x1] %vm265, %v264
    %s268 = scalar_lea.vmem %s0, 34
    %v269 = vld [vmem:[%s268] sm:$0x1]
    %270 = vrot.lane.b32.xlu0 %v269, 42
    %v271 = vpop.permute.xlu0 %270
    %vm272 = vcmask 384336
    %s273 = scalar_lea.vmem [#allocation0], 1
    %274 = vst.msk [vmem:[%s273] sm:$0x1] %vm272, %v271
    %s275 = scalar_lea.vmem %s0, 8
    %v276 = vld [vmem:[%s275] sm:$0x1]
    %277 = vrot.lane.b32.xlu0 %v276, 40
    %v278 = vpop.permute.xlu0 %277
    %vm279 = vcmask 367936
    %280 = vst.msk [vmem:[#allocation0] sm:$0x1] %vm279, %v278
    %s281 = scalar_lea.vmem %s0, 59
    %v282 = vld [vmem:[%s281] sm:$0x1]
    %283 = vrot.lane.b32.xlu0 %v282, 39
    %v284 = vpop.permute.xlu0 %283
    %vm285 = vcmask 359736
    %s286 = scalar_lea.vmem [#allocation0], 2
    %287 = vst.msk [vmem:[%s286] sm:$0x1] %vm285, %v284
    %s288 = scalar_lea.vmem %s0, 33
    %v289 = vld [vmem:[%s288] sm:$0x1]
    %290 = vrot.lane.b32.xlu0 %v289, 37
    %v291 = vpop.permute.xlu0 %290
    %vm292 = vcmask 343336
    %s293 = scalar_lea.vmem [#allocation0], 1
    %294 = vst.msk [vmem:[%s293] sm:$0x1] %vm292, %v291
    %s295 = scalar_lea.vmem %s0, 7
    %v296 = vld [vmem:[%s295] sm:$0x1]
    %297 = vrot.lane.b32.xlu0 %v296, 35
    %v298 = vpop.permute.xlu0 %297
    %vm299 = vcmask 326936
    %300 = vst.msk [vmem:[#allocation0] sm:$0x1] %vm299, %v298
    %s301 = scalar_lea.vmem %s0, 58
    %v302 = vld [vmem:[%s301] sm:$0x1]
    %303 = vrot.lane.b32.xlu0 %v302, 34
    %v304 = vpop.permute.xlu0 %303
    %vm305 = vcmask 318736
    %s306 = scalar_lea.vmem [#allocation0], 2
    %307 = vst.msk [vmem:[%s306] sm:$0x1] %vm305, %v304
    %s308 = scalar_lea.vmem %s0, 32
    %v309 = vld [vmem:[%s308] sm:$0x1]
    %310 = vrot.lane.b32.xlu0 %v309, 32
    %v311 = vpop.permute.xlu0 %310
    %vm312 = vcmask 302336
    %s313 = scalar_lea.vmem [#allocation0], 1
    %314 = vst.msk [vmem:[%s313] sm:$0x1] %vm312, %v311
    %s315 = scalar_lea.vmem %s0, 6
    %v316 = vld [vmem:[%s315] sm:$0x1]
    %317 = vrot.lane.b32.xlu0 %v316, 30
    %v318 = vpop.permute.xlu0 %317
    %vm319 = vcmask 285936
    %320 = vst.msk [vmem:[#allocation0] sm:$0x1] %vm319, %v318
    %s321 = scalar_lea.vmem %s0, 57
    %v322 = vld [vmem:[%s321] sm:$0x1]
    %323 = vrot.lane.b32.xlu0 %v322, 29
    %v324 = vpop.permute.xlu0 %323
    %vm325 = vcmask 277736
    %s326 = scalar_lea.vmem [#allocation0], 2
    %327 = vst.msk [vmem:[%s326] sm:$0x1] %vm325, %v324
    %s328 = scalar_lea.vmem %s0, 31
    %v329 = vld [vmem:[%s328] sm:$0x1]
    %330 = vrot.lane.b32.xlu0 %v329, 27
    %v331 = vpop.permute.xlu0 %330
    %vm332 = vcmask 261336
    %s333 = scalar_lea.vmem [#allocation0], 1
    %334 = vst.msk [vmem:[%s333] sm:$0x1] %vm332, %v331
    %s335 = scalar_lea.vmem %s0, 5
    %v336 = vld [vmem:[%s335] sm:$0x1]
    %337 = vrot.lane.b32.xlu0 %v336, 25
    %v338 = vpop.permute.xlu0 %337
    %vm339 = vcmask 244936
    %340 = vst.msk [vmem:[#allocation0] sm:$0x1] %vm339, %v338
    %s341 = scalar_lea.vmem %s0, 56
    %v342 = vld [vmem:[%s341] sm:$0x1]
    %343 = vrot.lane.b32.xlu0 %v342, 24
    %v344 = vpop.permute.xlu0 %343
    %vm345 = vcmask 236736
    %s346 = scalar_lea.vmem [#allocation0], 2
    %347 = vst.msk [vmem:[%s346] sm:$0x1] %vm345, %v344
    %s348 = scalar_lea.vmem %s0, 30
    %v349 = vld [vmem:[%s348] sm:$0x1]
    %350 = vrot.lane.b32.xlu0 %v349, 22
    %v351 = vpop.permute.xlu0 %350
    %vm352 = vcmask 220336
    %s353 = scalar_lea.vmem [#allocation0], 1
    %354 = vst.msk [vmem:[%s353] sm:$0x1] %vm352, %v351
    %s355 = scalar_lea.vmem %s0, 4
    %v356 = vld [vmem:[%s355] sm:$0x1]
    %357 = vrot.lane.b32.xlu0 %v356, 20
    %v358 = vpop.permute.xlu0 %357
    %vm359 = vcmask 203936
    %360 = vst.msk [vmem:[#allocation0] sm:$0x1] %vm359, %v358
    %s361 = scalar_lea.vmem %s0, 55
    %v362 = vld [vmem:[%s361] sm:$0x1]
    %363 = vrot.lane.b32.xlu0 %v362, 19
    %v364 = vpop.permute.xlu0 %363
    %vm365 = vcmask 195736
    %s366 = scalar_lea.vmem [#allocation0], 2
    %367 = vst.msk [vmem:[%s366] sm:$0x1] %vm365, %v364
    %s368 = scalar_lea.vmem %s0, 29
    %v369 = vld [vmem:[%s368] sm:$0x1]
    %370 = vrot.lane.b32.xlu0 %v369, 17
    %v371 = vpop.permute.xlu0 %370
    %vm372 = vcmask 179336
    %s373 = scalar_lea.vmem [#allocation0], 1
    %374 = vst.msk [vmem:[%s373] sm:$0x1] %vm372, %v371
    %s375 = scalar_lea.vmem %s0, 3
    %v376 = vld [vmem:[%s375] sm:$0x1]
    %377 = vrot.lane.b32.xlu0 %v376, 15
    %v378 = vpop.permute.xlu0 %377
    %vm379 = vcmask 162936
    %380 = vst.msk [vmem:[#allocation0] sm:$0x1] %vm379, %v378
    %s381 = scalar_lea.vmem %s0, 54
    %v382 = vld [vmem:[%s381] sm:$0x1]
    %383 = vrot.lane.b32.xlu0 %v382, 14
    %v384 = vpop.permute.xlu0 %383
    %vm385 = vcmask 154736
    %s386 = scalar_lea.vmem [#allocation0], 2
    %387 = vst.msk [vmem:[%s386] sm:$0x1] %vm385, %v384
    %s388 = scalar_lea.vmem %s0, 28
    %v389 = vld [vmem:[%s388] sm:$0x1]
    %390 = vrot.lane.b32.xlu0 %v389, 12
    %v391 = vpop.permute.xlu0 %390
    %vm392 = vcmask 138336
    %s393 = scalar_lea.vmem [#allocation0], 1
    %394 = vst.msk [vmem:[%s393] sm:$0x1] %vm392, %v391
    %s395 = scalar_lea.vmem %s0, 2
    %v396 = vld [vmem:[%s395] sm:$0x1]
    %397 = vrot.lane.b32.xlu0 %v396, 10
    %v398 = vpop.permute.xlu0 %397
    %vm399 = vcmask 121936
    %400 = vst.msk [vmem:[#allocation0] sm:$0x1] %vm399, %v398
    %s401 = scalar_lea.vmem %s0, 53
    %v402 = vld [vmem:[%s401] sm:$0x1]
    %403 = vrot.lane.b32.xlu0 %v402, 9
    %v404 = vpop.permute.xlu0 %403
    %vm405 = vcmask 113736
    %s406 = scalar_lea.vmem [#allocation0], 2
    %407 = vst.msk [vmem:[%s406] sm:$0x1] %vm405, %v404
    %s408 = scalar_lea.vmem %s0, 27
    %v409 = vld [vmem:[%s408] sm:$0x1]
    %410 = vrot.lane.b32.xlu0 %v409, 7
    %v411 = vpop.permute.xlu0 %410
    %vm412 = vcmask 97336
    %s413 = scalar_lea.vmem [#allocation0], 1
    %414 = vst.msk [vmem:[%s413] sm:$0x1] %vm412, %v411
    %s415 = scalar_lea.vmem %s0, 1
    %v416 = vld [vmem:[%s415] sm:$0x1]
    %417 = vrot.lane.b32.xlu0 %v416, 5
    %v418 = vpop.permute.xlu0 %417
    %vm419 = vcmask 80936
    %420 = vst.msk [vmem:[#allocation0] sm:$0x1] %vm419, %v418
    %s421 = scalar_lea.vmem %s0, 52
    %v422 = vld [vmem:[%s421] sm:$0x1]
    %423 = vrot.lane.b32.xlu0 %v422, 4
    %v424 = vpop.permute.xlu0 %423
    %vm425 = vcmask 72736
    %s426 = scalar_lea.vmem [#allocation0], 2
    %427 = vst.msk [vmem:[%s426] sm:$0x1] %vm425, %v424
    %s428 = scalar_lea.vmem %s0, 26
    %v429 = vld [vmem:[%s428] sm:$0x1]
    %430 = vrot.lane.b32.xlu0 %v429, 2
    %v431 = vpop.permute.xlu0 %430
    %vm432 = vcmask 56336
    %s433 = scalar_lea.vmem [#allocation0], 1
    %434 = vst.msk [vmem:[%s433] sm:$0x1] %vm432, %v431
    %s436 = sshllo.u32 0, 4
    %v438 = vld [vmem:[#allocation0] sm:%s436]
    %s439 = sshllo.u32 0, 4
    %440 = vst [vmem:[%s1] sm:%s439] %v438

// kernel: decoder_forward.1
$region0: #{decoder_forward.1}
  #allocation0 [shape = 'u32[]', space=smem, size = 0x4, offset = 0x4, fixed_abs, tag = 'smem constant byte address 0x4 - core index']
  #allocation1 [shape = 'u32[144,128]{1,0:T(1,128)}', space=vmem, size = 0x12000, scoped, tag = 'internal scratch']
  #allocation2 [shape = 'f32[1,1]{1,0:T(1,128)S(1)}', space=vmem, size = 0x200, scoped, tag = 'scoped memory for decoder_forward.1']
  %s0 = inlined_call_operand.vmem [shape: bf16[2,32,384], index: 0, kind: input, shape index: {}]
  %s1 = inlined_call_operand.vmem [shape: bf16[2,32,384], index: 1, kind: input, shape index: {}]
  %s2 = inlined_call_operand.vmem [shape: bf16[64,128], index: 2, kind: input, shape index: {}]
  %s3 = inlined_call_operand.vmem [shape: f32[64,1], index: 3, kind: input, shape index: {}]
  %s4 = inlined_call_operand.vmem [shape: bf16[32,64], index: 4, kind: input, shape index: {}]
  %s5 = inlined_call_operand.vmem [shape: f32[32,1], index: 5, kind: input, shape index: {}]
  %s6 = inlined_call_operand.vmem [shape: f32[32,1], index: 6, kind: input, shape index: {}]
  %s7 = inlined_call_operand.<no memory space> [shape: f32[1,1], index: 7, kind: input, shape index: {}]
  %s8 = inlined_call_operand.vmem [shape: f32[1,384], index: 8, kind: output, shape index: {}]
  %s9 = sld [smem:[#allocation0]]
  $region147: #{decoder_forward.1} parent=0
    _
  %s11 = ssub.s32 1, %s9
  %s12 = scalar_select 0, %s11, %s9
  %v13 = vstv %s7
  %14 = vst [vmem:[#allocation2] sm:$0x1] %v13
  $region1: #{decoder_forward.1} parent=0
    #allocation3 [shape = 'u8[32768]{0}', space=vmem, size = 0x8000, scoped, tag = 'input window, operand 0']
    #allocation4 [shape = 'u8[32768]{0}', space=vmem, size = 0x8000, scoped, tag = 'input window, operand 1']
    loop: start=0, step=1, limit=5
    $region2: #{decoder_forward.1} parent=1 // loop_pre_header
      _
    $region3: #{decoder_forward.1} parent=1 // loop_header
      %s16 = sphi 0, %s20
      %p17 = scmp.ge.s32.totalorder %s16, 5
      %s26 = sphi 0, %s28
      %s29 = sphi 0, %s26
      %s30 = sphi 0, %s29
      %s46 = sphi 0, %s30
      %s52 = sphi 0, %s54
      %s55 = sphi 0, %s52
      %s56 = sphi 0, %s55
      %s72 = sphi 0, %s56
      %s76 = sphi 0, %s76
      %s78 = sphi 0, %s76
      %s79 = sphi 0, %s78
      %s93 = sphi 0, %s79
      %s97 = sphi 0, %s97
      %s99 = sphi 0, %s97
      %s100 = sphi 0, %s99
      %s114 = sphi 0, %s100
      %s118 = sphi 0, %s118
      %s120 = sphi 0, %s118
      %s121 = sphi 0, %s120
      %s135 = sphi 0, %s121
      %s139 = sphi 0, %s139
      %s141 = sphi 0, %s139
      %s142 = sphi 0, %s141
      %s156 = sphi 0, %s142
      %s160 = sphi 0, %s160
      %s162 = sphi 0, %s160
      %s163 = sphi 0, %s162
      %s177 = sphi 0, %s163
      %s181 = sphi 0, %s181
      %s183 = sphi 0, %s181
      %s184 = sphi 0, %s183
      %s198 = sphi 0, %s184
      %s204 = sphi 0, %s206
      %s207 = sphi 0, %s204
      %s208 = sphi 0, %s207
      %s224 = sphi 0, %s208
    $region4: #{decoder_forward.1} parent=1 // loop_header_branch
      %19 = sbr.rel (%p17) target = $region8
    $region5: #{decoder_forward.1} parent=1 // loop_body
      %s21 = ssub.s32 %s16, 1
      %s22 = ssub.s32 %s16, 2
      %s23 = sadd.s32 %s16, 1
      %s24 = ssub.s32 %s16, %s23
      %p25 = scmp.eq.s32.totalorder %s24, 0
      %s27 = sadd.s32 %s26, 1
      %s28 = scalar_select %p25, %s26, %s27
      %p31 = pneg %p25
      %p32 = scmp.eq.s32.totalorder %s16, 2
      %p33 = por %p31, %p32
      %p34 = scmp.ne.s32.totalorder %s26, %s29
      %p35 = scmp.eq.s32.totalorder %s16, 0
      %p36 = por %p34, %p35
      %p37 = scmp.ne.s32.totalorder %s26, %s29
      %p38 = scmp.eq.s32.totalorder %s21, 2
      %p39 = por %p37, %p38
      %p40 = scmp.ne.s32.totalorder %s29, %s30
      %p41 = scmp.eq.s32.totalorder %s21, 0
      %p42 = por %p40, %p41
      %p43 = scmp.ne.s32.totalorder %s29, %s30
      %p44 = scmp.eq.s32.totalorder %s22, 2
      %p45 = por %p43, %p44
      %p47 = scmp.ne.s32.totalorder %s30, %s46
      %p48 = scmp.eq.s32.totalorder %s22, 0
      %p49 = por %p47, %p48
      %s50 = ssub.s32 %s16, %s23
      %p51 = scmp.eq.s32.totalorder %s50, 0
      %s53 = sadd.s32 %s52, 1
      %s54 = scalar_select %p51, %s52, %s53
      %p57 = pneg %p51
      %p58 = scmp.eq.s32.totalorder %s16, 2
      %p59 = por %p57, %p58
      %p60 = scmp.ne.s32.totalorder %s52, %s55
      %p61 = scmp.eq.s32.totalorder %s16, 0
      %p62 = por %p60, %p61
      %p63 = scmp.ne.s32.totalorder %s52, %s55
      %p64 = scmp.eq.s32.totalorder %s21, 2
      %p65 = por %p63, %p64
      %p66 = scmp.ne.s32.totalorder %s55, %s56
      %p67 = scmp.eq.s32.totalorder %s21, 0
      %p68 = por %p66, %p67
      %p69 = scmp.ne.s32.totalorder %s55, %s56
      %p70 = scmp.eq.s32.totalorder %s22, 2
      %p71 = por %p69, %p70
      %p73 = scmp.ne.s32.totalorder %s56, %s72
      %p74 = scmp.eq.s32.totalorder %s22, 0
      %p75 = por %p73, %p74
      %s77 = sadd.s32 %s76, 1
      %p80 = scmp.eq.s32.totalorder %s16, 2
      %p81 = scmp.ne.s32.totalorder %s76, %s78
      %p82 = scmp.eq.s32.totalorder %s16, 0
      %p83 = por %p81, %p82
      %p84 = scmp.ne.s32.totalorder %s76, %s78
      %p85 = scmp.eq.s32.totalorder %s21, 2
      %p86 = por %p84, %p85
      %p87 = scmp.ne.s32.totalorder %s78, %s79
      %p88 = scmp.eq.s32.totalorder %s21, 0
      %p89 = por %p87, %p88
      %p90 = scmp.ne.s32.totalorder %s78, %s79
      %p91 = scmp.eq.s32.totalorder %s22, 2
      %p92 = por %p90, %p91
      %p94 = scmp.ne.s32.totalorder %s79, %s93
      %p95 = scmp.eq.s32.totalorder %s22, 0
      %p96 = por %p94, %p95
      %s98 = sadd.s32 %s97, 1
      %p101 = scmp.eq.s32.totalorder %s16, 2
      %p102 = scmp.ne.s32.totalorder %s97, %s99
      %p103 = scmp.eq.s32.totalorder %s16, 0
      %p104 = por %p102, %p103
      %p105 = scmp.ne.s32.totalorder %s97, %s99
      %p106 = scmp.eq.s32.totalorder %s21, 2
      %p107 = por %p105, %p106
      %p108 = scmp.ne.s32.totalorder %s99, %s100
      %p109 = scmp.eq.s32.totalorder %s21, 0
      %p110 = por %p108, %p109
      %p111 = scmp.ne.s32.totalorder %s99, %s100
      %p112 = scmp.eq.s32.totalorder %s22, 2
      %p113 = por %p111, %p112
      %p115 = scmp.ne.s32.totalorder %s100, %s114
      %p116 = scmp.eq.s32.totalorder %s22, 0
      %p117 = por %p115, %p116
      %s119 = sadd.s32 %s118, 1
      %p122 = scmp.eq.s32.totalorder %s16, 2
      %p123 = scmp.ne.s32.totalorder %s118, %s120
      %p124 = scmp.eq.s32.totalorder %s16, 0
      %p125 = por %p123, %p124
      %p126 = scmp.ne.s32.totalorder %s118, %s120
      %p127 = scmp.eq.s32.totalorder %s21, 2
      %p128 = por %p126, %p127
      %p129 = scmp.ne.s32.totalorder %s120, %s121
      %p130 = scmp.eq.s32.totalorder %s21, 0
      %p131 = por %p129, %p130
      %p132 = scmp.ne.s32.totalorder %s120, %s121
      %p133 = scmp.eq.s32.totalorder %s22, 2
      %p134 = por %p132, %p133
      %p136 = scmp.ne.s32.totalorder %s121, %s135
      %p137 = scmp.eq.s32.totalorder %s22, 0
      %p138 = por %p136, %p137
      %s140 = sadd.s32 %s139, 1
      %p143 = scmp.eq.s32.totalorder %s16, 2
      %p144 = scmp.ne.s32.totalorder %s139, %s141
      %p145 = scmp.eq.s32.totalorder %s16, 0
      %p146 = por %p144, %p145
      %p147 = scmp.ne.s32.totalorder %s139, %s141
      %p148 = scmp.eq.s32.totalorder %s21, 2
      %p149 = por %p147, %p148
      %p150 = scmp.ne.s32.totalorder %s141, %s142
      %p151 = scmp.eq.s32.totalorder %s21, 0
      %p152 = por %p150, %p151
      %p153 = scmp.ne.s32.totalorder %s141, %s142
      %p154 = scmp.eq.s32.totalorder %s22, 2
      %p155 = por %p153, %p154
      %p157 = scmp.ne.s32.totalorder %s142, %s156
      %p158 = scmp.eq.s32.totalorder %s22, 0
      %p159 = por %p157, %p158
      %s161 = sadd.s32 %s160, 1
      %p164 = scmp.eq.s32.totalorder %s16, 2
      %p165 = scmp.ne.s32.totalorder %s160, %s162
      %p166 = scmp.eq.s32.totalorder %s16, 0
      %p167 = por %p165, %p166
      %p168 = scmp.ne.s32.totalorder %s160, %s162
      %p169 = scmp.eq.s32.totalorder %s21, 2
      %p170 = por %p168, %p169
      %p171 = scmp.ne.s32.totalorder %s162, %s163
      %p172 = scmp.eq.s32.totalorder %s21, 0
      %p173 = por %p171, %p172
      %p174 = scmp.ne.s32.totalorder %s162, %s163
      %p175 = scmp.eq.s32.totalorder %s22, 2
      %p176 = por %p174, %p175
      %p178 = scmp.ne.s32.totalorder %s163, %s177
      %p179 = scmp.eq.s32.totalorder %s22, 0
      %p180 = por %p178, %p179
      %s182 = sadd.s32 %s181, 1
      %p185 = scmp.eq.s32.totalorder %s16, 2
      %p186 = scmp.ne.s32.totalorder %s181, %s183
      %p187 = scmp.eq.s32.totalorder %s16, 0
      %p188 = por %p186, %p187
      %p189 = scmp.ne.s32.totalorder %s181, %s183
      %p190 = scmp.eq.s32.totalorder %s21, 2
      %p191 = por %p189, %p190
      %p192 = scmp.ne.s32.totalorder %s183, %s184
      %p193 = scmp.eq.s32.totalorder %s21, 0
      %p194 = por %p192, %p193
      %p195 = scmp.ne.s32.totalorder %s183, %s184
      %p196 = scmp.eq.s32.totalorder %s22, 2
      %p197 = por %p195, %p196
      %p199 = scmp.ne.s32.totalorder %s184, %s198
      %p200 = scmp.eq.s32.totalorder %s22, 0
      %p201 = por %p199, %p200
      %s202 = ssub.s32 %s16, %s23
      %p203 = scmp.eq.s32.totalorder %s202, 0
      %s205 = sadd.s32 %s204, 1
      %s206 = scalar_select %p203, %s204, %s205
      %p209 = pneg %p203
      %p210 = scmp.eq.s32.totalorder %s16, 2
      %p211 = por %p209, %p210
      %p212 = scmp.ne.s32.totalorder %s204, %s207
      %p213 = scmp.eq.s32.totalorder %s16, 0
      %p214 = por %p212, %p213
      %p215 = scmp.ne.s32.totalorder %s204, %s207
      %p216 = scmp.eq.s32.totalorder %s21, 2
      %p217 = por %p215, %p216
      %p218 = scmp.ne.s32.totalorder %s207, %s208
      %p219 = scmp.eq.s32.totalorder %s21, 0
      %p220 = por %p218, %p219
      %p221 = scmp.ne.s32.totalorder %s207, %s208
      %p222 = scmp.eq.s32.totalorder %s22, 2
      %p223 = por %p221, %p222
      %p225 = scmp.ne.s32.totalorder %s208, %s224
      %p226 = scmp.eq.s32.totalorder %s22, 0
      %p227 = por %p225, %p226
      %p228 = scmp.le.s32.totalorder 1, %s16
      %p229 = scmp.lt.s32.totalorder %s16, 4
      %p230 = pnand %p228, %p229
      %p231 = pneg %p230
      // Predicated region
      $region9: #{decoder_forward.1} parent=5 // pred_check
        _
      $region10: #{decoder_forward.1} parent=5 // pred_check_branch
        %233 = sbr.rel (%p230) target = $region12
      $region11: #{decoder_forward.1} parent=5 // pred_region
        %s234 = ssub.s32 %s16, 1
        // Predicated region
        $region13: #{decoder_forward.1} parent=11 // pred_check
          %p235 = pneg %p89
        $region14: #{decoder_forward.1} parent=11 // pred_check_branch
          %237 = sbr.rel (%p235) target = $region16
        $region15: #{decoder_forward.1} parent=11 // pred_region
          _
        $region16: #{decoder_forward.1} parent=11 // pred_fallthru
          _
        // Predicated region
        $region17: #{decoder_forward.1} parent=11 // pred_check
          %p238 = pneg %p110
        $region18: #{decoder_forward.1} parent=11 // pred_check_branch
          %240 = sbr.rel (%p238) target = $region20
        $region19: #{decoder_forward.1} parent=11 // pred_region
          _
        $region20: #{decoder_forward.1} parent=11 // pred_fallthru
          _
        // Predicated region
        $region21: #{decoder_forward.1} parent=11 // pred_check
          %p241 = pneg %p131
        $region22: #{decoder_forward.1} parent=11 // pred_check_branch
          %243 = sbr.rel (%p241) target = $region24
        $region23: #{decoder_forward.1} parent=11 // pred_region
          _
        $region24: #{decoder_forward.1} parent=11 // pred_fallthru
          _
        // Predicated region
        $region25: #{decoder_forward.1} parent=11 // pred_check
          %p244 = pneg %p152
        $region26: #{decoder_forward.1} parent=11 // pred_check_branch
          %246 = sbr.rel (%p244) target = $region28
        $region27: #{decoder_forward.1} parent=11 // pred_region
          _
        $region28: #{decoder_forward.1} parent=11 // pred_fallthru
          _
        // Predicated region
        $region29: #{decoder_forward.1} parent=11 // pred_check
          %p247 = pneg %p173
        $region30: #{decoder_forward.1} parent=11 // pred_check_branch
          %249 = sbr.rel (%p247) target = $region32
        $region31: #{decoder_forward.1} parent=11 // pred_region
          _
        $region32: #{decoder_forward.1} parent=11 // pred_fallthru
          _
        // Predicated region
        $region33: #{decoder_forward.1} parent=11 // pred_check
          %p250 = pneg %p194
        $region34: #{decoder_forward.1} parent=11 // pred_check_branch
          %252 = sbr.rel (%p250) target = $region36
        $region35: #{decoder_forward.1} parent=11 // pred_region
          _
        $region36: #{decoder_forward.1} parent=11 // pred_fallthru
          _
      $region12: #{decoder_forward.1} parent=5 // pred_fallthru
        _
      %p253 = scmp.lt.s32.totalorder %s16, 3
      // Predicated region
      $region37: #{decoder_forward.1} parent=5 // pred_check
        %p254 = pneg %p253
      $region38: #{decoder_forward.1} parent=5 // pred_check_branch
        %256 = sbr.rel (%p254) target = $region40
      $region39: #{decoder_forward.1} parent=5 // pred_region
        // Predicated region
        $region41: #{decoder_forward.1} parent=39 // pred_check
          %p257 = pneg %p36
        $region42: #{decoder_forward.1} parent=39 // pred_check_branch
          %259 = sbr.rel (%p257) target = $region44
        $region43: #{decoder_forward.1} parent=39 // pred_region
          %s260 = sand.u32 %s26, 1
          %s261 = sand.u32 %s26, 1
          %s262 = smul.addr %s261, 32
          %s263 = scalar_lea.vmem [#allocation3], %s262
          %s264 = smul.addr %s16, 4
          %s265 = scalar_lea.vmem %s0, %s264
          // Predicated region
          $region45: #{decoder_forward.1} parent=43 // pred_check
            _
          $region46: #{decoder_forward.1} parent=43 // pred_check_branch
            %267 = sbr.rel (0) target = $region48
          $region47: #{decoder_forward.1} parent=43 // pred_region
            // Predicated region
            $region49: #{decoder_forward.1} parent=47 // pred_check
              _
            $region50: #{decoder_forward.1} parent=47 // pred_check_branch
              %269 = sbr.rel target = $region52
            $region51: #{decoder_forward.1} parent=47 // pred_region
              // Predicated region
              $region64: #{decoder_forward.1} parent=51 // pred_check
                _
              $region65: #{decoder_forward.1} parent=51 // pred_check_branch
                %298 = sbr.rel (0) target = $region67
              $region66: #{decoder_forward.1} parent=51 // pred_region
                loop: start=0, step=1, limit=1
                $region68: #{decoder_forward.1} parent=66 // loop_pre_header
                  _
                $region69: #{decoder_forward.1} parent=66 // loop_header
                  %s300 = sphi 0, %s304
                  %p301 = scmp.ge.s32.totalorder %s300, 1
                  %s305 = sphi %s265, %s265
                  %s306 = sphi %s263, %s263
                $region70: #{decoder_forward.1} parent=66 // loop_header_branch
                  %303 = sbr.rel (%p301) target = $region74
                $region71: #{decoder_forward.1} parent=66 // loop_body
                  _
                $region72: #{decoder_forward.1} parent=66 // loop_footer
                  %s304 = sadd.s32 1, %s300
                $region73: #{decoder_forward.1} parent=66 // loop_footer_branch
                  %299 = sbr.rel target = $region69
                $region74: #{decoder_forward.1} parent=66 // loop_exit
                  _
                loop: start=0, step=1, limit=1
                $region75: #{decoder_forward.1} parent=66 // loop_pre_header
                  _
                $region76: #{decoder_forward.1} parent=66 // loop_header
                  %s309 = sphi 0, %s313
                  %p310 = scmp.ge.s32.totalorder %s309, 1
                  %s314 = sphi %s265, %s265
                  %s315 = sphi %s263, %s263
                $region77: #{decoder_forward.1} parent=66 // loop_header_branch
                  %312 = sbr.rel (%p310) target = $region81
                $region78: #{decoder_forward.1} parent=66 // loop_body
                  %v316 = vld [vmem:[%s314] sm:$0xf]
                  %317 = vst [vmem:[%s315] sm:$0xf] %v316
                  %v318 = vld [vmem:[%s314 + $0xc] sm:$0xf]
                  %319 = vst [vmem:[%s315 + $0x4] sm:$0xf] %v318
                  %v320 = vld [vmem:[%s314 + $0x18] sm:$0xf]
                  %321 = vst [vmem:[%s315 + $0x8] sm:$0xf] %v320
                  %v322 = vld [vmem:[%s314 + $0x24] sm:$0xf]
                  %323 = vst [vmem:[%s315 + $0xc] sm:$0xf] %v322
                  %v324 = vld [vmem:[%s314 + $0x30] sm:$0xf]
                  %325 = vst [vmem:[%s315 + $0x10] sm:$0xf] %v324
                  %v326 = vld [vmem:[%s314 + $0x3c] sm:$0xf]
                  %327 = vst [vmem:[%s315 + $0x14] sm:$0xf] %v326
                  %v328 = vld [vmem:[%s314 + $0x48] sm:$0xf]
                  %329 = vst [vmem:[%s315 + $0x18] sm:$0xf] %v328
                  %v330 = vld [vmem:[%s314 + $0x54] sm:$0xf]
                  %331 = vst [vmem:[%s315 + $0x1c] sm:$0xf] %v330
                $region79: #{decoder_forward.1} parent=66 // loop_footer
                  %s313 = sadd.s32 1, %s309
                $region80: #{decoder_forward.1} parent=66 // loop_footer_branch
                  %308 = sbr.rel target = $region76
                $region81: #{decoder_forward.1} parent=66 // loop_exit
                  _
              $region67: #{decoder_forward.1} parent=51 // pred_fallthru
                _
            $region52: #{decoder_forward.1} parent=47 // pred_fallthru
              _
            // Predicated region
            $region53: #{decoder_forward.1} parent=47 // pred_check
              _
            $region54: #{decoder_forward.1} parent=47 // pred_check_branch
              %271 = sbr.rel (0) target = $region56
            $region55: #{decoder_forward.1} parent=47 // pred_region
              loop: start=0, step=1, limit=1
              $region57: #{decoder_forward.1} parent=55 // loop_pre_header
                _
              $region58: #{decoder_forward.1} parent=55 // loop_header
                %s274 = sphi 0, %s278
                %p275 = scmp.ge.s32.totalorder %s274, 1
                %s279 = sphi %s265, %s265
                %s280 = sphi %s263, %s263
              $region59: #{decoder_forward.1} parent=55 // loop_header_branch
                %277 = sbr.rel (%p275) target = $region63
              $region60: #{decoder_forward.1} parent=55 // loop_body
                %v281 = vld [vmem:[%s279] sm:$0xf]
                %282 = vst [vmem:[%s280] sm:$0xf] %v281
                %v283 = vld [vmem:[%s279 + $0xc] sm:$0xf]
                %284 = vst [vmem:[%s280 + $0x4] sm:$0xf] %v283
                %v285 = vld [vmem:[%s279 + $0x18] sm:$0xf]
                %286 = vst [vmem:[%s280 + $0x8] sm:$0xf] %v285
                %v287 = vld [vmem:[%s279 + $0x24] sm:$0xf]
                %288 = vst [vmem:[%s280 + $0xc] sm:$0xf] %v287
                %v289 = vld [vmem:[%s279 + $0x30] sm:$0xf]
                %290 = vst [vmem:[%s280 + $0x10] sm:$0xf] %v289
                %v291 = vld [vmem:[%s279 + $0x3c] sm:$0xf]
                %292 = vst [vmem:[%s280 + $0x14] sm:$0xf] %v291
                %v293 = vld [vmem:[%s279 + $0x48] sm:$0xf]
                %294 = vst [vmem:[%s280 + $0x18] sm:$0xf] %v293
                %v295 = vld [vmem:[%s279 + $0x54] sm:$0xf]
                %296 = vst [vmem:[%s280 + $0x1c] sm:$0xf] %v295
              $region61: #{decoder_forward.1} parent=55 // loop_footer
                %s278 = sadd.s32 1, %s274
              $region62: #{decoder_forward.1} parent=55 // loop_footer_branch
                %273 = sbr.rel target = $region58
              $region63: #{decoder_forward.1} parent=55 // loop_exit
                _
            $region56: #{decoder_forward.1} parent=47 // pred_fallthru
              _
          $region48: #{decoder_forward.1} parent=43 // pred_fallthru
            _
          %332 = vnop
        $region44: #{decoder_forward.1} parent=39 // pred_fallthru
          _
        // Predicated region
        $region82: #{decoder_forward.1} parent=39 // pred_check
          %p333 = pneg %p62
        $region83: #{decoder_forward.1} parent=39 // pred_check_branch
          %335 = sbr.rel (%p333) target = $region85
        $region84: #{decoder_forward.1} parent=39 // pred_region
          %s336 = sand.u32 %s52, 1
          %s337 = sand.u32 %s52, 1
          %s338 = smul.addr %s337, 32
          %s339 = scalar_lea.vmem [#allocation4], %s338
          %s340 = smul.addr %s16, 4
          %s341 = scalar_lea.vmem %s1, %s340
          // Predicated region
          $region86: #{decoder_forward.1} parent=84 // pred_check
            _
          $region87: #{decoder_forward.1} parent=84 // pred_check_branch
            %343 = sbr.rel (0) target = $region89
          $region88: #{decoder_forward.1} parent=84 // pred_region
            // Predicated region
            $region90: #{decoder_forward.1} parent=88 // pred_check
              _
            $region91: #{decoder_forward.1} parent=88 // pred_check_branch
              %345 = sbr.rel target = $region93
            $region92: #{decoder_forward.1} parent=88 // pred_region
              // Predicated region
              $region105: #{decoder_forward.1} parent=92 // pred_check
                _
              $region106: #{decoder_forward.1} parent=92 // pred_check_branch
                %374 = sbr.rel (0) target = $region108
              $region107: #{decoder_forward.1} parent=92 // pred_region
                loop: start=0, step=1, limit=1
                $region109: #{decoder_forward.1} parent=107 // loop_pre_header
                  _
                $region110: #{decoder_forward.1} parent=107 // loop_header
                  %s376 = sphi 0, %s380
                  %p377 = scmp.ge.s32.totalorder %s376, 1
                  %s381 = sphi %s341, %s341
                  %s382 = sphi %s339, %s339
                $region111: #{decoder_forward.1} parent=107 // loop_header_branch
                  %379 = sbr.rel (%p377) target = $region115
                $region112: #{decoder_forward.1} parent=107 // loop_body
                  _
                $region113: #{decoder_forward.1} parent=107 // loop_footer
                  %s380 = sadd.s32 1, %s376
                $region114: #{decoder_forward.1} parent=107 // loop_footer_branch
                  %375 = sbr.rel target = $region110
                $region115: #{decoder_forward.1} parent=107 // loop_exit
                  _
                loop: start=0, step=1, limit=1
                $region116: #{decoder_forward.1} parent=107 // loop_pre_header
                  _
                $region117: #{decoder_forward.1} parent=107 // loop_header
                  %s385 = sphi 0, %s389
                  %p386 = scmp.ge.s32.totalorder %s385, 1
                  %s390 = sphi %s341, %s341
                  %s391 = sphi %s339, %s339
                $region118: #{decoder_forward.1} parent=107 // loop_header_branch
                  %388 = sbr.rel (%p386) target = $region122
                $region119: #{decoder_forward.1} parent=107 // loop_body
                  %v392 = vld [vmem:[%s390] sm:$0xf]
                  %393 = vst [vmem:[%s391] sm:$0xf] %v392
                  %v394 = vld [vmem:[%s390 + $0xc] sm:$0xf]
                  %395 = vst [vmem:[%s391 + $0x4] sm:$0xf] %v394
                  %v396 = vld [vmem:[%s390 + $0x18] sm:$0xf]
                  %397 = vst [vmem:[%s391 + $0x8] sm:$0xf] %v396
                  %v398 = vld [vmem:[%s390 + $0x24] sm:$0xf]
                  %399 = vst [vmem:[%s391 + $0xc] sm:$0xf] %v398
                  %v400 = vld [vmem:[%s390 + $0x30] sm:$0xf]
                  %401 = vst [vmem:[%s391 + $0x10] sm:$0xf] %v400
                  %v402 = vld [vmem:[%s390 + $0x3c] sm:$0xf]
                  %403 = vst [vmem:[%s391 + $0x14] sm:$0xf] %v402
                  %v404 = vld [vmem:[%s390 + $0x48] sm:$0xf]
                  %405 = vst [vmem:[%s391 + $0x18] sm:$0xf] %v404
                  %v406 = vld [vmem:[%s390 + $0x54] sm:$0xf]
                  %407 = vst [vmem:[%s391 + $0x1c] sm:$0xf] %v406
                $region120: #{decoder_forward.1} parent=107 // loop_footer
                  %s389 = sadd.s32 1, %s385
                $region121: #{decoder_forward.1} parent=107 // loop_footer_branch
                  %384 = sbr.rel target = $region117
                $region122: #{decoder_forward.1} parent=107 // loop_exit
                  _
              $region108: #{decoder_forward.1} parent=92 // pred_fallthru
                _
            $region93: #{decoder_forward.1} parent=88 // pred_fallthru
              _
            // Predicated region
            $region94: #{decoder_forward.1} parent=88 // pred_check
              _
            $region95: #{decoder_forward.1} parent=88 // pred_check_branch
              %347 = sbr.rel (0) target = $region97
            $region96: #{decoder_forward.1} parent=88 // pred_region
              loop: start=0, step=1, limit=1
              $region98: #{decoder_forward.1} parent=96 // loop_pre_header
                _
              $region99: #{decoder_forward.1} parent=96 // loop_header
                %s350 = sphi 0, %s354
                %p351 = scmp.ge.s32.totalorder %s350, 1
                %s355 = sphi %s341, %s341
                %s356 = sphi %s339, %s339
              $region100: #{decoder_forward.1} parent=96 // loop_header_branch
                %353 = sbr.rel (%p351) target = $region104
              $region101: #{decoder_forward.1} parent=96 // loop_body
                %v357 = vld [vmem:[%s355] sm:$0xf]
                %358 = vst [vmem:[%s356] sm:$0xf] %v357
                %v359 = vld [vmem:[%s355 + $0xc] sm:$0xf]
                %360 = vst [vmem:[%s356 + $0x4] sm:$0xf] %v359
                %v361 = vld [vmem:[%s355 + $0x18] sm:$0xf]
                %362 = vst [vmem:[%s356 + $0x8] sm:$0xf] %v361
                %v363 = vld [vmem:[%s355 + $0x24] sm:$0xf]
                %364 = vst [vmem:[%s356 + $0xc] sm:$0xf] %v363
                %v365 = vld [vmem:[%s355 + $0x30] sm:$0xf]
                %366 = vst [vmem:[%s356 + $0x10] sm:$0xf] %v365
                %v367 = vld [vmem:[%s355 + $0x3c] sm:$0xf]
                %368 = vst [vmem:[%s356 + $0x14] sm:$0xf] %v367
                %v369 = vld [vmem:[%s355 + $0x48] sm:$0xf]
                %370 = vst [vmem:[%s356 + $0x18] sm:$0xf] %v369
                %v371 = vld [vmem:[%s355 + $0x54] sm:$0xf]
                %372 = vst [vmem:[%s356 + $0x1c] sm:$0xf] %v371
              $region102: #{decoder_forward.1} parent=96 // loop_footer
                %s354 = sadd.s32 1, %s350
              $region103: #{decoder_forward.1} parent=96 // loop_footer_branch
                %349 = sbr.rel target = $region99
              $region104: #{decoder_forward.1} parent=96 // loop_exit
                _
            $region97: #{decoder_forward.1} parent=88 // pred_fallthru
              _
          $region89: #{decoder_forward.1} parent=84 // pred_fallthru
            _
          %408 = vnop
        $region85: #{decoder_forward.1} parent=39 // pred_fallthru
          _
      $region40: #{decoder_forward.1} parent=5 // pred_fallthru
        _
      %p409 = scmp.le.s32.totalorder 1, %s16
      %p410 = scmp.lt.s32.totalorder %s16, 4
      %p411 = pnand %p409, %p410
      %p412 = pneg %p411
      // Predicated region
      $region123: #{decoder_forward.1} parent=5 // pred_check
        _
      $region124: #{decoder_forward.1} parent=5 // pred_check_branch
        %414 = sbr.rel (%p411) target = $region126
      $region125: #{decoder_forward.1} parent=5 // pred_region
        %s415 = ssub.s32 %s16, 1
        %s416 = sand.u32 %s29, 1
        %s417 = sand.u32 %s29, 1
        %s418 = smul.addr %s417, 32
        %s419 = scalar_lea.vmem [#allocation3], %s418
        // Predicated region
        $region127: #{decoder_forward.1} parent=125 // pred_check
          %p420 = pneg %p42
        $region128: #{decoder_forward.1} parent=125 // pred_check_branch
          %422 = sbr.rel (%p420) target = $region130
        $region129: #{decoder_forward.1} parent=125 // pred_region
          _
        $region130: #{decoder_forward.1} parent=125 // pred_fallthru
          _
        %s423 = sand.u32 %s55, 1
        %s424 = sand.u32 %s55, 1
        %s425 = smul.addr %s424, 32
        %s426 = scalar_lea.vmem [#allocation4], %s425
        // Predicated region
        $region131: #{decoder_forward.1} parent=125 // pred_check
          %p427 = pneg %p68
        $region132: #{decoder_forward.1} parent=125 // pred_check_branch
          %429 = sbr.rel (%p427) target = $region134
        $region133: #{decoder_forward.1} parent=125 // pred_region
          _
        $region134: #{decoder_forward.1} parent=125 // pred_fallthru
          _
        %s430 = sand.u32 %s29, 1
        %s431 = sand.u32 %s29, 1
        %s432 = smul.addr %s431, 32
        %s433 = scalar_lea.vmem [#allocation3], %s432
        %p434 = pneg %p42
        %p435 = pneg %p39
        %s436 = sand.u32 %s55, 1
        %s437 = sand.u32 %s55, 1
        %s438 = smul.addr %s437, 32
        %s439 = scalar_lea.vmem [#allocation4], %s438
        %p440 = pneg %p68
        %p441 = pneg %p65
        %p442 = pneg %p89
        %p443 = pneg %p86
        %p444 = pneg %p110
        %p445 = pneg %p107
        %p446 = pneg %p131
        %p447 = pneg %p128
        %p448 = pneg %p152
        %p449 = pneg %p149
        %p450 = pneg %p173
        %p451 = pneg %p170
        %p452 = pneg %p194
        %p453 = pneg %p191
        %p454 = pneg %p220
        %p455 = pneg %p217
        %p456 = scmp.lt.s32.totalorder %s21, 2
        %s457 = scalar_select %p456, %s21, 2
        %s458 = scalar_lea.vmem %s8, %s457
        %p459 = scmp.lt.s32.totalorder %s21, 2
        %s460 = scalar_select %p459, %s21, 2
        %s461 = scalar_lea.vmem %s8, %s460
        %v463 = vld [vmem:[%s419] sm:$0xf]
        %v464 = vld [vmem:[%s419 + $0x4] sm:$0xf]
        %v465 = vld [vmem:[%s419 + $0x8] sm:$0xf]
        %v466 = vld [vmem:[%s419 + $0xc] sm:$0xf]
        %v467 = vld [vmem:[%s426] sm:$0xf]
        %v468 = vld [vmem:[%s426 + $0x4] sm:$0xf]
        %v469 = vld [vmem:[%s426 + $0x8] sm:$0xf]
        %v470 = vld [vmem:[%s426 + $0xc] sm:$0xf]
        %v471 = vmul.bf16 %v463, %v467
        %v472 = vmul.bf16 %v464, %v468
        %v473 = vmul.bf16 %v465, %v469
        %v474 = vmul.bf16 %v466, %v470
        %s475 = scalar_lea.vmem %s426, 16 [#allocation4]
        %v476 = vld [vmem:[%s475] sm:$0xf]
        %v477 = vld [vmem:[%s475 + $0x4] sm:$0xf]
        %v478 = vld [vmem:[%s475 + $0x8] sm:$0xf]
        %v479 = vld [vmem:[%s475 + $0xc] sm:$0xf]
        %v480 = vmul.bf16 %v463, %v476
        %v481 = vmul.bf16 %v464, %v477
        %v482 = vmul.bf16 %v465, %v478
        %v483 = vmul.bf16 %v466, %v479
        %s484 = scalar_lea.vmem %s419, 16 [#allocation3]
        %v485 = vld [vmem:[%s484] sm:$0xf]
        %v486 = vld [vmem:[%s484 + $0x4] sm:$0xf]
        %v487 = vld [vmem:[%s484 + $0x8] sm:$0xf]
        %v488 = vld [vmem:[%s484 + $0xc] sm:$0xf]
        %v489 = vmul.bf16 %v485, %v467
        %v490 = vmul.bf16 %v486, %v468
        %v491 = vmul.bf16 %v487, %v469
        %v492 = vmul.bf16 %v488, %v470
        %v493 = vmul.bf16 %v485, %v476
        %v494 = vmul.bf16 %v486, %v477
        %v495 = vmul.bf16 %v487, %v478
        %v496 = vmul.bf16 %v488, %v479
        %v501 = vunpack.c.l.b16 %v471
        %v502 = vunpack.c.l.b16 %v472
        %v503 = vunpack.c.l.b16 %v473
        %v504 = vunpack.c.l.b16 %v474
        %v505 = vpack.c.b16 %v502, %v501
        %v506 = vpack.c.b16 %v504, %v503
        %v513 = vunpack.c.l.b16 %v480
        %v514 = vunpack.c.l.b16 %v481
        %v515 = vunpack.c.l.b16 %v482
        %v516 = vunpack.c.l.b16 %v483
        %v517 = vpack.c.b16 %v514, %v513
        %v518 = vpack.c.b16 %v516, %v515
        %v525 = vunpack.c.l.b16 %v489
        %v526 = vunpack.c.l.b16 %v490
        %v527 = vunpack.c.l.b16 %v491
        %v528 = vunpack.c.l.b16 %v492
        %v529 = vpack.c.b16 %v526, %v525
        %v530 = vpack.c.b16 %v528, %v527
        %v537 = vunpack.c.l.b16 %v493
        %v538 = vunpack.c.l.b16 %v494
        %v539 = vunpack.c.l.b16 %v495
        %v540 = vunpack.c.l.b16 %v496
        %v541 = vpack.c.b16 %v538, %v537
        %v542 = vpack.c.b16 %v540, %v539
        %v545 = vld [vmem:[%s2] sm:$0xf]
        %v546 = vld [vmem:[%s2 + $0x4] sm:$0xf]
        %v547 = vld [vmem:[%s2 + $0x8] sm:$0xf]
        %v548 = vld [vmem:[%s2 + $0xc] sm:$0xf]
        %v549 = vld [vmem:[%s2 + $0x10] sm:$0xf]
        %v550 = vld [vmem:[%s2 + $0x14] sm:$0xf]
        %v551 = vld [vmem:[%s2 + $0x18] sm:$0xf]
        %v552 = vld [vmem:[%s2 + $0x1c] sm:$0xf]
        %v553 = vld [vmem:[%s3] sm:$0xff]
        %v554 = vld [vmem:[%s3 + $0x8] sm:$0xff]
        %v555 = vld [vmem:[%s3 + $0x10] sm:$0xff]
        %v556 = vld [vmem:[%s3 + $0x18] sm:$0xff]
        %v557 = vld [vmem:[%s3 + $0x20] sm:$0xff]
        %v558 = vld [vmem:[%s3 + $0x28] sm:$0xff]
        %v559 = vld [vmem:[%s3 + $0x30] sm:$0xff]
        %v560 = vld [vmem:[%s3 + $0x38] sm:$0xff]
        %562 = vset.pattern.permute.xlu0 0
        %563 = vperm.xlu0 %562, %v553
        %v564 = vpop.permute.xlu0 %563
        %567 = vset.pattern.permute.xlu0 0
        %568 = vperm.xlu0 %567, %v554
        %v569 = vpop.permute.xlu0 %568
        %572 = vset.pattern.permute.xlu0 0
        %573 = vperm.xlu0 %572, %v555
        %v574 = vpop.permute.xlu0 %573
        %577 = vset.pattern.permute.xlu0 0
        %578 = vperm.xlu0 %577, %v556
        %v579 = vpop.permute.xlu0 %578
        %582 = vset.pattern.permute.xlu0 0
        %583 = vperm.xlu0 %582, %v557
        %v584 = vpop.permute.xlu0 %583
        %587 = vset.pattern.permute.xlu0 0
        %588 = vperm.xlu0 %587, %v558
        %v589 = vpop.permute.xlu0 %588
        %592 = vset.pattern.permute.xlu0 0
        %593 = vperm.xlu0 %592, %v559
        %v594 = vpop.permute.xlu0 %593
        %597 = vset.pattern.permute.xlu0 0
        %598 = vperm.xlu0 %597, %v560
        %v599 = vpop.permute.xlu0 %598
        %v609 = vunpack.c.l.b16 %v545
        %v610 = vunpack.c.l.b16 %v546
        %v611 = vunpack.c.l.b16 %v547
        %v612 = vunpack.c.l.b16 %v548
        %v613 = vunpack.c.l.b16 %v549
        %v614 = vunpack.c.l.b16 %v550
        %v615 = vunpack.c.l.b16 %v551
        %v616 = vunpack.c.l.b16 %v552
        %v617 = vpack.c.b16 %v610, %v609
        %v618 = vpack.c.b16 %v612, %v611
        %v619 = vpack.c.b16 %v614, %v613
        %v620 = vpack.c.b16 %v616, %v615
        %625 = vmatprep.subr.bf16.mxu0 0
        %626 = vmatpush1.bf16.msra.mxu0 %v505
        %627 = vmatprep.subr.bf16.mxu0 0
        %628 = vmatpush1.bf16.msra.mxu0 %v506
        %629 = vmatprep.subr.bf16.mxu0 0
        %630 = vmatpush1.bf16.msra.mxu0 %v517
        %631 = vmatprep.subr.bf16.mxu0 0
        %632 = vmatpush1.bf16.msra.mxu0 %v518
        %633 = vmatprep.subr.bf16.mxu0 0
        %634 = vmatpush1.bf16.msra.mxu0 %v529
        %635 = vmatprep.subr.bf16.mxu0 0
        %636 = vmatpush1.bf16.msra.mxu0 %v530
        %637 = vmatprep.subr.bf16.mxu0 0
        %638 = vmatpush1.bf16.msra.mxu0 %v541
        %639 = vmatprep.subr.bf16.mxu0 0
        %640 = vmatpush1.bf16.msra.mxu0 %v542
        %641 = vmatprep.subr.bf16.mxu0 0
        %642 = vmatpush1.bf16.msra.mxu0 0
        %643 = vmatprep.subr.bf16.mxu0 0
        %644 = vmatpush1.bf16.msra.mxu0 0
        %645 = vmatprep.subr.bf16.mxu0 0
        %646 = vmatpush1.bf16.msra.mxu0 0
        %647 = vmatprep.subr.bf16.mxu0 0
        %648 = vmatpush1.bf16.msra.mxu0 0
        %649 = vmatprep.subr.bf16.mxu0 0
        %650 = vmatpush1.bf16.msra.mxu0 0
        %651 = vmatprep.subr.bf16.mxu0 0
        %652 = vmatpush1.bf16.msra.mxu0 0
        %653 = vmatprep.subr.bf16.mxu0 0
        %654 = vmatpush1.bf16.msra.mxu0 0
        %655 = vmatprep.subr.bf16.mxu0 0
        %656 = vmatpush1.bf16.msra.mxu0 0
        %657 = vmatprep.mubr.bf16.mxu0 0
        %658 = vmatmul.mubr.bf16.gmra.mrb[0].mxu0 %v617
        %v659 = vpop.f32.mrb[0].mxu0
        %v660 = vadd.f32 %v564, %v659
        %v661 = vpop.f32.mrb[0].mxu0
        %v662 = vpop.f32.mrb[0].mxu0
        %v663 = vadd.f32 %v569, %v662
        %v664 = vpop.f32.mrb[0].mxu0
        %665 = vmatprep.mubr.bf16.mxu0 0
        %666 = vmatmul.mubr.bf16.gmra.mrb[0].mxu0 %v618
        %v667 = vpop.f32.mrb[0].mxu0
        %v668 = vadd.f32 %v574, %v667
        %v669 = vpop.f32.mrb[0].mxu0
        %v670 = vpop.f32.mrb[0].mxu0
        %v671 = vadd.f32 %v579, %v670
        %v672 = vpop.f32.mrb[0].mxu0
        %673 = vmatprep.mubr.bf16.mxu0 0
        %674 = vmatmul.mubr.bf16.gmra.mrb[0].mxu0 %v619
        %v675 = vpop.f32.mrb[0].mxu0
        %v676 = vadd.f32 %v584, %v675
        %v677 = vpop.f32.mrb[0].mxu0
        %v678 = vpop.f32.mrb[0].mxu0
        %v679 = vadd.f32 %v589, %v678
        %v680 = vpop.f32.mrb[0].mxu0
        %681 = vmatprep.mubr.bf16.mxu0 0
        %682 = vmatmul.mubr.bf16.gmra.mrb[0].mxu0 %v620
        %v683 = vpop.f32.mrb[0].mxu0
        %v684 = vadd.f32 %v594, %v683
        %v685 = vpop.f32.mrb[0].mxu0
        %v686 = vpop.f32.mrb[0].mxu0
        %v687 = vadd.f32 %v599, %v686
        %v688 = vpop.f32.mrb[0].mxu0
        %689 = vdwg.mxu0
        %v690 = vmax.f32 %v660, 0.0
        %v691 = vmax.f32 %v663, 0.0
        %v692 = vmax.f32 %v668, 0.0
        %v693 = vmax.f32 %v671, 0.0
        %v694 = vmax.f32 %v676, 0.0
        %v695 = vmax.f32 %v679, 0.0
        %v696 = vmax.f32 %v684, 0.0
        %v697 = vmax.f32 %v687, 0.0
        %v698 = vld [vmem:[%s4] sm:$0xf]
        %v699 = vld [vmem:[%s4 + $0x4] sm:$0xf]
        %v700 = vld [vmem:[%s4 + $0x8] sm:$0xf]
        %v701 = vld [vmem:[%s4 + $0xc] sm:$0xf]
        %v702 = vpack.c.bf16 %v691, %v690
        %v703 = vpack.c.bf16 %v693, %v692
        %v704 = vpack.c.bf16 %v695, %v694
        %v705 = vpack.c.bf16 %v697, %v696
        %v706 = vld [vmem:[%s5] sm:$0xff]
        %v707 = vld [vmem:[%s5 + $0x8] sm:$0xff]
        %v708 = vld [vmem:[%s5 + $0x10] sm:$0xff]
        %v709 = vld [vmem:[%s5 + $0x18] sm:$0xff]
        %711 = vset.pattern.permute.xlu0 0
        %712 = vperm.xlu0 %711, %v706
        %v713 = vpop.permute.xlu0 %712
        %716 = vset.pattern.permute.xlu0 0
        %717 = vperm.xlu0 %716, %v707
        %v718 = vpop.permute.xlu0 %717
        %721 = vset.pattern.permute.xlu0 0
        %722 = vperm.xlu0 %721, %v708
        %v723 = vpop.permute.xlu0 %722
        %726 = vset.pattern.permute.xlu0 0
        %727 = vperm.xlu0 %726, %v709
        %v728 = vpop.permute.xlu0 %727
        %v734 = vunpack.c.l.b16 %v698
        %v735 = vunpack.c.l.b16 %v699
        %v736 = vunpack.c.l.b16 %v700
        %v737 = vunpack.c.l.b16 %v701
        %v738 = vpack.c.b16 %v735, %v734
        %v739 = vpack.c.b16 %v737, %v736
        %vm740 = vcmask 523264
        %v742 = vsel %vm740, %v738, 0
        %v745 = vsel %vm740, %v739, 0
        %747 = vmatprep.subr.bf16.mxu0 0
        %748 = vmatpush1.bf16.msra.mxu0 %v702
        %749 = vmatprep.subr.bf16.mxu0 0
        %750 = vmatpush1.bf16.msra.mxu0 %v703
        %751 = vmatprep.subr.bf16.mxu0 0
        %752 = vmatpush1.bf16.msra.mxu0 %v704
        %753 = vmatprep.subr.bf16.mxu0 0
        %754 = vmatpush1.bf16.msra.mxu0 %v705
        %755 = vmatprep.subr.bf16.mxu0 0
        %756 = vmatpush1.bf16.msra.mxu0 0
        %757 = vmatprep.subr.bf16.mxu0 0
        %758 = vmatpush1.bf16.msra.mxu0 0
        %759 = vmatprep.subr.bf16.mxu0 0
        %760 = vmatpush1.bf16.msra.mxu0 0
        %761 = vmatprep.subr.bf16.mxu0 0
        %762 = vmatpush1.bf16.msra.mxu0 0
        %763 = vmatprep.subr.bf16.mxu0 0
        %764 = vmatpush1.bf16.msra.mxu0 0
        %765 = vmatprep.subr.bf16.mxu0 0
        %766 = vmatpush1.bf16.msra.mxu0 0
        %767 = vmatprep.subr.bf16.mxu0 0
        %768 = vmatpush1.bf16.msra.mxu0 0
        %769 = vmatprep.subr.bf16.mxu0 0
        %770 = vmatpush1.bf16.msra.mxu0 0
        %771 = vmatprep.subr.bf16.mxu0 0
        %772 = vmatpush1.bf16.msra.mxu0 0
        %773 = vmatprep.subr.bf16.mxu0 0
        %774 = vmatpush1.bf16.msra.mxu0 0
        %775 = vmatprep.subr.bf16.mxu0 0
        %776 = vmatpush1.bf16.msra.mxu0 0
        %777 = vmatprep.subr.bf16.mxu0 0
        %778 = vmatpush1.bf16.msra.mxu0 0
        %779 = vmatprep.mubr.bf16.mxu0 0
        %780 = vmatmul.mubr.bf16.gmra.mrb[0].mxu0 %v742
        %v781 = vpop.f32.mrb[0].mxu0
        %v782 = vadd.f32 %v713, %v781
        %v783 = vpop.f32.mrb[0].mxu0
        %v784 = vpop.f32.mrb[0].mxu0
        %v785 = vadd.f32 %v718, %v784
        %v786 = vpop.f32.mrb[0].mxu0
        %787 = vmatprep.mubr.bf16.mxu0 0
        %788 = vmatmul.mubr.bf16.gmra.mrb[0].mxu0 %v745
        %v789 = vpop.f32.mrb[0].mxu0
        %v790 = vadd.f32 %v723, %v789
        %v791 = vpop.f32.mrb[0].mxu0
        %v792 = vpop.f32.mrb[0].mxu0
        %v793 = vadd.f32 %v728, %v792
        %v794 = vpop.f32.mrb[0].mxu0
        %795 = vdwg.mxu0
        %v796 = vmax.f32 %v782, 0.0
        %v797 = vmax.f32 %v785, 0.0
        %v798 = vmax.f32 %v790, 0.0
        %v799 = vmax.f32 %v793, 0.0
        %v800 = vld [vmem:[%s6] sm:$0xff]
        %v801 = vld [vmem:[%s6 + $0x8] sm:$0xff]
        %v802 = vld [vmem:[%s6 + $0x10] sm:$0xff]
        %v803 = vld [vmem:[%s6 + $0x18] sm:$0xff]
        %805 = vset.pattern.permute.xlu0 0
        %806 = vperm.xlu0 %805, %v800
        %v807 = vpop.permute.xlu0 %806
        %810 = vset.pattern.permute.xlu0 0
        %811 = vperm.xlu0 %810, %v801
        %v812 = vpop.permute.xlu0 %811
        %815 = vset.pattern.permute.xlu0 0
        %816 = vperm.xlu0 %815, %v802
        %v817 = vpop.permute.xlu0 %816
        %820 = vset.pattern.permute.xlu0 0
        %821 = vperm.xlu0 %820, %v803
        %v822 = vpop.permute.xlu0 %821
        %v824 = vmul.f32 %v796, %v807
        %v825 = vmul.f32 %v797, %v812
        %v826 = vmul.f32 %v798, %v817
        %v827 = vmul.f32 %v799, %v822
        %v828 = vadd.f32 %v824, %v825
        %v829 = vadd.f32 %v828, %v826
        %v830 = vadd.f32 %v829, %v827
        %v831 = vrot.slane %v830, 4
        %v832 = vadd.f32 %v830, %v831
        %v833 = vrot.slane %v832, 2
        %v834 = vadd.f32 %v832, %v833
        %v835 = vrot.slane %v834, 1
        %v836 = vadd.f32 %v834, %v835
        %v837 = vld [vmem:[#allocation2] sm:$0x1]
        %839 = vset.pattern.permute.xlu0 0
        %840 = vperm.xlu0 %839, %v837
        %v841 = vpop.permute.xlu0 %840
        %v843 = vlaneseq
        %v844 = vshrl.u32 %v843, 7
        %v845 = vsub.s32 0, %v844
        %v846 = vrot.slane %v841, %v845
        %v847 = vadd.f32 %v836, %v846
        %v848 = vxor.u32 %v847, 2147483648
        %v849 = vmul.f32 %v848, 1.442695
        %v850 = vpow.pop %v849
        %v851 = vadd.f32 %v850, 1.0
        %v852 = vrcp.pop %v851
        %v853 = vmul.f32 1.0, %v852
        %v854 = vmul.f32 %v853, 1.442695
        %v855 = vpow.pop %v854
        %856 = vst [vmem:[%s461] sm:$0x1] %v855
        %p857 = scmp.lt.s32.totalorder %s21, 2
        %s858 = scalar_select %p857, %s21, 2
        %s859 = scalar_lea.vmem %s8, %s858
        // Predicated region
        $region135: #{decoder_forward.1} parent=125 // pred_check
          %p860 = pneg %p217
        $region136: #{decoder_forward.1} parent=125 // pred_check_branch
          %862 = sbr.rel (%p860) target = $region138
        $region137: #{decoder_forward.1} parent=125 // pred_region
          _
        $region138: #{decoder_forward.1} parent=125 // pred_fallthru
          _
      $region126: #{decoder_forward.1} parent=5 // pred_fallthru
        _
      %p863 = scmp.le.s32.totalorder 2, %s16
      // Predicated region
      $region139: #{decoder_forward.1} parent=5 // pred_check
        %p864 = pneg %p863
      $region140: #{decoder_forward.1} parent=5 // pred_check_branch
        %866 = sbr.rel (%p864) target = $region142
      $region141: #{decoder_forward.1} parent=5 // pred_region
        %s867 = ssub.s32 %s16, 2
        // Predicated region
        $region143: #{decoder_forward.1} parent=141 // pred_check
          %p868 = pneg %p223
        $region144: #{decoder_forward.1} parent=141 // pred_check_branch
          %870 = sbr.rel (%p868) target = $region146
        $region145: #{decoder_forward.1} parent=141 // pred_region
          %p871 = scmp.lt.s32.totalorder %s22, 2
          %s872 = scalar_select %p871, %s22, 2
          %s873 = scalar_lea.vmem %s8, %s872
        $region146: #{decoder_forward.1} parent=141 // pred_fallthru
          _
      $region142: #{decoder_forward.1} parent=5 // pred_fallthru
        _
    $region6: #{decoder_forward.1} parent=1 // loop_footer
      %s20 = sadd.s32 1, %s16
    $region7: #{decoder_forward.1} parent=1 // loop_footer_branch
      %15 = sbr.rel target = $region3
    $region8: #{decoder_forward.1} parent=1 // loop_exit
      _

</llo_original>
